<compile_context>
chip_gen: v7x
topology: tpu7x:2x2x1
jax: 0.10.0
libtpu: 0.0.40
codegen_flags: <defaults>
</compile_context>

<pallas_src>
import math
from functools import partial

import jax
import jax.numpy as jnp
from jax import lax
from jax.experimental import pallas as pl
from jax.experimental.pallas import tpu as pltpu


# ----------------------------- in-kernel helpers -----------------------------

def _layer_norm(x, gamma, beta, eps=1e-5):
    mu = jnp.mean(x, axis=-1, keepdims=True)
    var = jnp.mean((x - mu) ** 2, axis=-1, keepdims=True)
    return (x - mu) * lax.rsqrt(var + eps) * gamma + beta


def _gelu_exact(x):
    # PyTorch nn.GELU() default (erf-based, not tanh approximation)
    return 0.5 * x * (1.0 + lax.erf(x * jnp.float32(1.0 / math.sqrt(2.0))))


# ----------------------------- Pallas kernels --------------------------------

def gpt_blocks_kernel(num_heads,
                      x_ref, g1_ref, b1_ref, wqkv_ref, bqkv_ref,
                      wo_ref, bo_ref, g2_ref, b2_ref,
                      w1_ref, bf1_ref, w2_ref, bf2_ref,
                      o_ref):
    """All transformer blocks, fused.  grid = (B, L); the (S, E) activation is
    carried across the L axis in the resident output block."""
    l = pl.program_id(1)
    H = num_heads

    @pl.when(l == 0)
    def _():
        o_ref[0] = x_ref[0]            # load embeddings into the resident carry

    x = o_ref[0]                        # (S, E) f32, carried across layers
    S, E = x.shape

    # --- ln1 + causal multi-head self-attention (heads batched, bf16 MXU) ---
    y = _layer_norm(x, g1_ref[0], b1_ref[0])                       # f32 (S, E)
    yb = jnp.broadcast_to(y.astype(jnp.bfloat16), (3 * H, S, E))   # (3H, S, E)
    qkv = jnp.einsum('hse,hed->hsd', yb, wqkv_ref[0],
                     preferred_element_type=jnp.float32) + bqkv_ref[0]  # (3H,S,Dh)
    q = qkv[0:H]               # 1/sqrt(Dh) already folded into W_q / b_q
    k = qkv[H:2 * H]
    v = qkv[2 * H:3 * H]

    row = lax.broadcasted_iota(jnp.int32, (S, S), 0)
    col = lax.broadcasted_iota(jnp.int32, (S, S), 1)
    causal = (col <= row)[None]                                     # (1, S, S)

    s = jnp.einsum('hqd,hkd->hqk', q.astype(jnp.bfloat16),
                   k.astype(jnp.bfloat16),
                   preferred_element_type=jnp.float32)              # (H, S, S)
    s = jnp.where(causal, s, jnp.float32(-1e30))   # finite mask: no NaN risk
    s = s - jnp.max(s, axis=-1, keepdims=True)
    p = jnp.exp(s)
    p = p * pl.reciprocal(jnp.sum(p, axis=-1, keepdims=True), approx=True)

    ctx = jnp.einsum('hqk,hkd->hqd', p.astype(jnp.bfloat16),
                     v.astype(jnp.bfloat16),
                     preferred_element_type=jnp.float32)            # (H, S, Dh)
    proj = jnp.einsum('hsd,hde->hse', ctx.astype(jnp.bfloat16), wo_ref[0],
                      preferred_element_type=jnp.float32)           # (H, S, E)
    attn = jnp.sum(proj, axis=0) + bo_ref[0]                        # (S, E)

    x1 = x + attn                            # residual (dropout = identity)

    # --- ln2 + feed-forward ---
    y2 = _layer_norm(x1, g2_ref[0], b2_ref[0])
    hdn = jnp.dot(y2.astype(jnp.bfloat16), w1_ref[0],
                  preferred_element_type=jnp.float32) + bf1_ref[0]
    hdn = _gelu_exact(hdn)
    ff = jnp.dot(hdn.astype(jnp.bfloat16), w2_ref[0],
                 preferred_element_type=jnp.float32) + bf2_ref[0]

    o_ref[0] = x1 + ff                       # residual (dropout = identity)


def head_kernel(x_ref, g_ref, b_ref, wh_ref, o_ref):
    """Final LayerNorm + (tokens, E) @ (E, vocab-tile) projection."""
    y = _layer_norm(x_ref[...], g_ref[...], b_ref[...])
    o_ref[...] = jnp.dot(y.astype(jnp.bfloat16), wh_ref[...],
                         preferred_element_type=jnp.float32)


# ----------------------------- wrappers ---------------------------------------

def _pick_tile(n, candidates):
    for c in candidates:
        if n >= c and n % c == 0:
            return c
    return n


def _stacked_spec(arr):
    """BlockSpec selecting layer l of an (L, ...)-stacked weight."""
    blk = (1,) + arr.shape[1:]
    zeros = (0,) * (arr.ndim - 1)
    return pl.BlockSpec(blk, lambda b, l, _z=zeros: (l,) + _z)


def _stack_block_params(blocks, num_heads):
    """Stack per-layer params on a leading L axis, reshape attention weights to
    head-batched layouts, fold 1/sqrt(Dh) into Q, cast matmul weights to bf16."""
    E = blocks[0]["wqkv"].shape[0]
    H = num_heads
    Dh = E // H
    scale = jnp.float32(1.0 / math.sqrt(Dh))

    def wqkv_heads(bp):
        w = bp["wqkv"].reshape(E, 3, H, Dh)                    # (E,3,H,Dh)
        w = jnp.transpose(w, (1, 2, 0, 3)).reshape(3 * H, E, Dh)
        w = w.at[:H].multiply(scale)                           # fold scale into Q
        return w.astype(jnp.bfloat16)

    def bqkv_heads(bp):
        b = bp["bqkv"].reshape(3 * H, Dh)[:, None, :]          # (3H,1,Dh)
        return b.at[:H].multiply(scale).astype(jnp.float32)

    def wo_heads(bp):
        return bp["wo"].reshape(H, Dh, E).astype(jnp.bfloat16)

    fns = dict(
        g1=lambda bp: bp["g1"], b1=lambda bp: bp["b1"],
        wqkv=wqkv_heads, bqkv=bqkv_heads,
        wo=wo_heads, bo=lambda bp: bp["bo"],
        g2=lambda bp: bp["g2"], b2=lambda bp: bp["b2"],
        w1=lambda bp: bp["w1"].astype(jnp.bfloat16), bf1=lambda bp: bp["bf1"],
        w2=lambda bp: bp["w2"].astype(jnp.bfloat16), bf2=lambda bp: bp["bf2"],
    )
    return {k: jnp.stack([fn(bp) for bp in blocks], axis=0) for k, fn in fns.items()}


def gpt_blocks(x, stacked, num_heads):
    B, S, E = x.shape
    L = stacked["g1"].shape[0]
    names = ("g1", "b1", "wqkv", "bqkv", "wo", "bo",
             "g2", "b2", "w1", "bf1", "w2", "bf2")
    weights = [stacked[k] for k in names]

    in_specs = [pl.BlockSpec((1, S, E), lambda b, l: (b, 0, 0))]
    in_specs += [_stacked_spec(w) for w in weights]

    return pl.pallas_call(
        partial(gpt_blocks_kernel, num_heads),
        out_shape=jax.ShapeDtypeStruct((B, S, E), jnp.float32),
        grid=(B, L),
        in_specs=in_specs,
        out_specs=pl.BlockSpec((1, S, E), lambda b, l: (b, 0, 0)),
        compiler_params=pltpu.CompilerParams(
            dimension_semantics=("parallel", "arbitrary"),
            vmem_limit_bytes=32 * 1024 * 1024),
    )(x, *weights)


def final_head(x, gamma, beta, w_head):
    B, S, E = x.shape
    V = w_head.shape[1]
    T = B * S
    x2 = x.reshape(T, E)                               # collapse (B,S) -> tokens
    wh = w_head.astype(jnp.bfloat16)
    t_tok = _pick_tile(T, (256, 128, 64, 32, 16, 8))
    t_v = _pick_tile(V, (4096, 2048, 1024, 512, 256, 128))

    out = pl.pallas_call(
        head_kernel,
        out_shape=jax.ShapeDtypeStruct((T, V), jnp.float32),
        grid=(T // t_tok, V // t_v),
        in_specs=[pl.BlockSpec((t_tok, E), lambda i, j: (i, 0)),
                  pl.BlockSpec((1, E), lambda i, j: (0, 0)),
                  pl.BlockSpec((1, E), lambda i, j: (0, 0)),
                  pl.BlockSpec((E, t_v), lambda i, j: (0, j))],
        out_specs=pl.BlockSpec((t_tok, t_v), lambda i, j: (i, j)),
        compiler_params=pltpu.CompilerParams(
            dimension_semantics=("parallel", "parallel"),
            vmem_limit_bytes=32 * 1024 * 1024),
    )(x2, gamma, beta, wh)
    return out.reshape(B, S, V)


def gpt_forward(input_ids, params, num_heads):
    B, S = input_ids.shape
    # glue: embedding gather + positional embedding (dropout = identity)
    x = params["token_emb"][input_ids] + params["pos_emb"][:, :S, :]
    stacked = _stack_block_params(params["blocks"], num_heads)
    x = gpt_blocks(x.astype(jnp.float32), stacked, num_heads)
    return final_head(x, params["gf"], params["bf"], params["w_head"])


# ----------------------------- deterministic params ---------------------------

def init_params(key, vocab_size, max_len, embed_dim, num_layers):
    std = 0.02
    E = embed_dim
    keys = jax.random.split(key, 2 + num_layers)
    params = {
        "token_emb": jax.random.normal(keys[0], (vocab_size, E), jnp.float32) * std,
        "pos_emb": jnp.zeros((1, max_len, E), jnp.float32),   # nn.Parameter(torch.zeros)
        "gf": jnp.ones((1, E), jnp.float32),
        "bf": jnp.zeros((1, E), jnp.float32),
        "w_head": jax.random.normal(keys[1], (E, vocab_size), jnp.float32) * std,
        "blocks": [],
    }
    for l in range(num_layers):
        bk = jax.random.split(keys[2 + l], 4)
        params["blocks"].append(dict(
            g1=jnp.ones((1, E), jnp.float32),
            b1=jnp.zeros((1, E), jnp.float32),
            wqkv=jax.random.normal(bk[0], (E, 3 * E), jnp.float32) * std,
            bqkv=jnp.zeros((1, 3 * E), jnp.float32),
            wo=jax.random.normal(bk[1], (E, E), jnp.float32) * std,
            bo=jnp.zeros((1, E), jnp.float32),
            g2=jnp.ones((1, E), jnp.float32),
            b2=jnp.zeros((1, E), jnp.float32),
            w1=jax.random.normal(bk[2], (E, 4 * E), jnp.float32) * std,
            bf1=jnp.zeros((1, 4 * E), jnp.float32),
            w2=jax.random.normal(bk[3], (4 * E, E), jnp.float32) * std,
            bf2=jnp.zeros((1, E), jnp.float32),
        ))
    return params


# ----------------------------- main -------------------------------------------

if __name__ == "__main__":
    vocab_size = 64
    max_len = 16
    embed_dim = 32
    num_layers = 2
    num_heads = 4
    batch, seq = 2, 8
    assert embed_dim % num_heads == 0

    key = jax.random.PRNGKey(0)
    pkey, dkey = jax.random.split(key)
    params = init_params(pkey, vocab_size, max_len, embed_dim, num_layers)
    input_ids = jax.random.randint(dkey, (batch, seq), 0, vocab_size, dtype=jnp.int32)

    logits = gpt_forward(input_ids, params, num_heads)
    jax.block_until_ready(logits)
    assert logits.shape == (batch, seq, vocab_size)
    assert bool(jnp.all(jnp.isfinite(logits)))
    print("KERNEL_OK")
</pallas_src>

<mosaic_0001>
module attributes {stable_mosaic.version = 11 : i64} {
  func.func @gpt_blocks_kernel(%arg0: i32, %arg1: i32, %arg2: memref<1x8x32xf32, #tpu.memory_space<vmem>>, %arg3: memref<1x1x32xf32, #tpu.memory_space<vmem>>, %arg4: memref<1x1x32xf32, #tpu.memory_space<vmem>>, %arg5: memref<1x12x32x8xbf16, #tpu.memory_space<vmem>>, %arg6: memref<1x12x1x8xf32, #tpu.memory_space<vmem>>, %arg7: memref<1x4x8x32xbf16, #tpu.memory_space<vmem>>, %arg8: memref<1x1x32xf32, #tpu.memory_space<vmem>>, %arg9: memref<1x1x32xf32, #tpu.memory_space<vmem>>, %arg10: memref<1x1x32xf32, #tpu.memory_space<vmem>>, %arg11: memref<1x32x128xbf16, #tpu.memory_space<vmem>>, %arg12: memref<1x1x128xf32, #tpu.memory_space<vmem>>, %arg13: memref<1x128x32xbf16, #tpu.memory_space<vmem>>, %arg14: memref<1x1x32xf32, #tpu.memory_space<vmem>>, %arg15: memref<1x8x32xf32, #tpu.memory_space<vmem>>) attributes {dimension_semantics = [#tpu.dimension_semantics<parallel>, #tpu.dimension_semantics<arbitrary>], iteration_bounds = array<i64: 2, 2>, scalar_prefetch = 0 : i64, scratch_operands = 0 : i64, tpu.core_type = #tpu.core_type<tc>, window_params = [{transform_indices = @transform_0, window_bounds = array<i64: 1, 8, 32>}, {transform_indices = @transform_1, window_bounds = array<i64: 1, 1, 32>}, {transform_indices = @transform_2, window_bounds = array<i64: 1, 1, 32>}, {transform_indices = @transform_3, window_bounds = array<i64: 1, 12, 32, 8>}, {transform_indices = @transform_4, window_bounds = array<i64: 1, 12, 1, 8>}, {transform_indices = @transform_5, window_bounds = array<i64: 1, 4, 8, 32>}, {transform_indices = @transform_6, window_bounds = array<i64: 1, 1, 32>}, {transform_indices = @transform_7, window_bounds = array<i64: 1, 1, 32>}, {transform_indices = @transform_8, window_bounds = array<i64: 1, 1, 32>}, {transform_indices = @transform_9, window_bounds = array<i64: 1, 32, 128>}, {transform_indices = @transform_10, window_bounds = array<i64: 1, 1, 128>}, {transform_indices = @transform_11, window_bounds = array<i64: 1, 128, 32>}, {transform_indices = @transform_12, window_bounds = array<i64: 1, 1, 32>}, {transform_indices = @transform_13, window_bounds = array<i64: 1, 8, 32>}]} {
    %c0_i32 = arith.constant 0 : i32
    %0 = arith.cmpi eq, %arg1, %c0_i32 : i32
    %1 = arith.extui %0 : i1 to i32
    %c0_i32_0 = arith.constant 0 : i32
    %2 = arith.cmpi ne, %1, %c0_i32_0 : i32
    scf.if %2 {
      %c0_67 = arith.constant 0 : index
      %c0_68 = arith.constant 0 : index
      %c0_69 = arith.constant 0 : index
      %132 = vector.load %arg2[%c0_67, %c0_68, %c0_69] : memref<1x8x32xf32, #tpu.memory_space<vmem>>, vector<1x8x32xf32>
      %133 = vector.shape_cast %132 : vector<1x8x32xf32> to vector<8x32xf32>
      %c0_70 = arith.constant 0 : index
      %c0_71 = arith.constant 0 : index
      %c0_72 = arith.constant 0 : index
      %134 = vector.load %arg15[%c0_70, %c0_71, %c0_72] : memref<1x8x32xf32, #tpu.memory_space<vmem>>, vector<1x8x32xf32>
      %135 = vector.shape_cast %134 : vector<1x8x32xf32> to vector<8x32xf32>
      %136 = vector.shape_cast %133 : vector<8x32xf32> to vector<1x8x32xf32>
      tpu.vector_store %arg15[%c0_70, %c0_71, %c0_72], %136 {strides = array<i32>} : memref<1x8x32xf32, #tpu.memory_space<vmem>>, vector<1x8x32xf32>,
    } else {
    }
    %c0 = arith.constant 0 : index
    %c0_1 = arith.constant 0 : index
    %c0_2 = arith.constant 0 : index
    %3 = vector.load %arg15[%c0, %c0_1, %c0_2] : memref<1x8x32xf32, #tpu.memory_space<vmem>>, vector<1x8x32xf32>
    %4 = vector.shape_cast %3 : vector<1x8x32xf32> to vector<8x32xf32>
    %c0_3 = arith.constant 0 : index
    %c0_4 = arith.constant 0 : index
    %c0_5 = arith.constant 0 : index
    %5 = vector.load %arg3[%c0_3, %c0_4, %c0_5] : memref<1x1x32xf32, #tpu.memory_space<vmem>>, vector<1x1x32xf32>
    %6 = vector.shape_cast %5 : vector<1x1x32xf32> to vector<1x32xf32>
    %c0_6 = arith.constant 0 : index
    %c0_7 = arith.constant 0 : index
    %c0_8 = arith.constant 0 : index
    %7 = vector.load %arg4[%c0_6, %c0_7, %c0_8] : memref<1x1x32xf32, #tpu.memory_space<vmem>>, vector<1x1x32xf32>
    %8 = vector.shape_cast %7 : vector<1x1x32xf32> to vector<1x32xf32>
    %cst = arith.constant dense<0.000000e+00> : vector<8xf32>
    %9 = vector.multi_reduction <add>, %4, %cst [1] : vector<8x32xf32> to vector<8xf32>
    %10 = vector.shape_cast %9 : vector<8xf32> to vector<8x1xf32>
    %cst_9 = arith.constant 3.200000e+01 : f32
    %11 = vector.broadcast %cst_9 : f32 to vector<8x1xf32>
    %12 = arith.divf %10, %11 : vector<8x1xf32>
    %13 = vector.broadcast %12 : vector<8x1xf32> to vector<8x32xf32>
    %14 = arith.subf %4, %13 : vector<8x32xf32>
    %15 = arith.mulf %14, %14 : vector<8x32xf32>
    %cst_10 = arith.constant dense<0.000000e+00> : vector<8xf32>
    %16 = vector.multi_reduction <add>, %15, %cst_10 [1] : vector<8x32xf32> to vector<8xf32>
    %17 = vector.shape_cast %16 : vector<8xf32> to vector<8x1xf32>
    %cst_11 = arith.constant 3.200000e+01 : f32
    %18 = vector.broadcast %cst_11 : f32 to vector<8x1xf32>
    %19 = arith.divf %17, %18 : vector<8x1xf32>
    %20 = vector.broadcast %12 : vector<8x1xf32> to vector<8x32xf32>
    %21 = arith.subf %4, %20 : vector<8x32xf32>
    %cst_12 = arith.constant 9.99999974E-6 : f32
    %22 = vector.broadcast %cst_12 : f32 to vector<8x1xf32>
    %23 = arith.addf %19, %22 : vector<8x1xf32>
    %24 = math.rsqrt %23 : vector<8x1xf32>
    %25 = vector.broadcast %24 : vector<8x1xf32> to vector<8x32xf32>
    %26 = arith.mulf %21, %25 : vector<8x32xf32>
    %27 = vector.broadcast %6 : vector<1x32xf32> to vector<8x32xf32>
    %28 = arith.mulf %26, %27 : vector<8x32xf32>
    %29 = vector.broadcast %8 : vector<1x32xf32> to vector<8x32xf32>
    %30 = arith.addf %28, %29 : vector<8x32xf32>
    %31 = arith.truncf %30 : vector<8x32xf32> to vector<8x32xbf16>
    %32 = vector.shape_cast %31 : vector<8x32xbf16> to vector<1x8x32xbf16>
    %33 = vector.broadcast %32 : vector<1x8x32xbf16> to vector<12x8x32xbf16>
    %c0_13 = arith.constant 0 : index
    %c0_14 = arith.constant 0 : index
    %c0_15 = arith.constant 0 : index
    %c0_16 = arith.constant 0 : index
    %34 = vector.load %arg5[%c0_13, %c0_14, %c0_15, %c0_16] : memref<1x12x32x8xbf16, #tpu.memory_space<vmem>>, vector<1x12x32x8xbf16>
    %35 = vector.shape_cast %34 : vector<1x12x32x8xbf16> to vector<12x32x8xbf16>
    "tpu.trace_start"() <{level = 10 : i32, message = "hse,hed->hsd"}> : () -> ()
    %cst_17 = arith.constant dense<0.000000e+00> : vector<12x8x8xf32>
    %36 = tpu.matmul %33, %35, %cst_17 {dimension_numbers = #tpu.dot_dimension_numbers<[2], [1], [1], [2], [0, 0, 0, 1, 1, 2], [0], [0]>} : vector<12x8x32xbf16>, vector<12x32x8xbf16>, vector<12x8x8xf32> -> vector<12x8x8xf32>
    "tpu.trace_stop"() : () -> ()
    %c0_18 = arith.constant 0 : index
    %c0_19 = arith.constant 0 : index
    %c0_20 = arith.constant 0 : index
    %c0_21 = arith.constant 0 : index
    %37 = vector.load %arg6[%c0_18, %c0_19, %c0_20, %c0_21] : memref<1x12x1x8xf32, #tpu.memory_space<vmem>>, vector<1x12x1x8xf32>
    %38 = vector.shape_cast %37 : vector<1x12x1x8xf32> to vector<12x1x8xf32>
    %39 = vector.broadcast %38 : vector<12x1x8xf32> to vector<12x8x8xf32>
    %40 = arith.addf %36, %39 : vector<12x8x8xf32>
    %41 = vector.extract_strided_slice %40 {offsets = [0, 0, 0], sizes = [4, 8, 8], strides = [1, 1, 1]} : vector<12x8x8xf32> to vector<4x8x8xf32>
    %42 = vector.extract_strided_slice %40 {offsets = [4, 0, 0], sizes = [4, 8, 8], strides = [1, 1, 1]} : vector<12x8x8xf32> to vector<4x8x8xf32>
    %43 = vector.extract_strided_slice %40 {offsets = [8, 0, 0], sizes = [4, 8, 8], strides = [1, 1, 1]} : vector<12x8x8xf32> to vector<4x8x8xf32>
    %44 = tpu.iota {dimensions = array<i32: 0>} : vector<8x8xi32>
    %45 = tpu.iota {dimensions = array<i32: 1>} : vector<8x8xi32>
    %46 = arith.cmpi sle, %45, %44 : vector<8x8xi32>
    %47 = vector.shape_cast %46 : vector<8x8xi1> to vector<1x8x8xi1>
    %48 = arith.truncf %41 : vector<4x8x8xf32> to vector<4x8x8xbf16>
    %49 = arith.truncf %42 : vector<4x8x8xf32> to vector<4x8x8xbf16>
    "tpu.trace_start"() <{level = 10 : i32, message = "hqd,hkd->hqk"}> : () -> ()
    %cst_22 = arith.constant dense<0.000000e+00> : vector<4x8x8xf32>
    %50 = tpu.matmul %48, %49, %cst_22 {dimension_numbers = #tpu.dot_dimension_numbers<[2], [2], [1], [1], [0, 0, 0, 1, 1, 1], [0], [0]>} : vector<4x8x8xbf16>, vector<4x8x8xbf16>, vector<4x8x8xf32> -> vector<4x8x8xf32>
    %cst_23 = arith.constant -1.000000e+30 : f32
    "tpu.trace_stop"() : () -> ()
    %51 = vector.shape_cast %47 : vector<1x8x8xi1> to vector<1x8x8xi1>
    %52 = vector.broadcast %51 : vector<1x8x8xi1> to vector<4x8x8xi1>
    %53 = vector.broadcast %cst_23 : f32 to vector<4x8x8xf32>
    %54 = arith.select %52, %50, %53 : vector<4x8x8xi1>, vector<4x8x8xf32>
    %cst_24 = arith.constant dense<0xFF800000> : vector<4x8xf32>
    %55 = vector.multi_reduction <maximumf>, %54, %cst_24 [2] : vector<4x8x8xf32> to vector<4x8xf32>
    %56 = vector.shape_cast %55 : vector<4x8xf32> to vector<4x8x1xf32>
    %57 = vector.broadcast %56 : vector<4x8x1xf32> to vector<4x8x8xf32>
    %58 = arith.subf %54, %57 : vector<4x8x8xf32>
    %59 = math.exp %58 : vector<4x8x8xf32>
    %cst_25 = arith.constant dense<0.000000e+00> : vector<4x8xf32>
    %60 = vector.multi_reduction <add>, %59, %cst_25 [2] : vector<4x8x8xf32> to vector<4x8xf32>
    %61 = vector.shape_cast %60 : vector<4x8xf32> to vector<4x8x1xf32>
    %62 = tpu.reciprocal %61 {approx = true} : vector<4x8x1xf32> -> vector<4x8x1xf32>
    %63 = vector.broadcast %62 : vector<4x8x1xf32> to vector<4x8x8xf32>
    %64 = arith.mulf %59, %63 : vector<4x8x8xf32>
    %65 = arith.truncf %64 : vector<4x8x8xf32> to vector<4x8x8xbf16>
    %66 = arith.truncf %43 : vector<4x8x8xf32> to vector<4x8x8xbf16>
    "tpu.trace_start"() <{level = 10 : i32, message = "hqk,hkd->hqd"}> : () -> ()
    %cst_26 = arith.constant dense<0.000000e+00> : vector<4x8x8xf32>
    %67 = tpu.matmul %65, %66, %cst_26 {dimension_numbers = #tpu.dot_dimension_numbers<[2], [1], [1], [2], [0, 0, 0, 1, 1, 2], [0], [0]>} : vector<4x8x8xbf16>, vector<4x8x8xbf16>, vector<4x8x8xf32> -> vector<4x8x8xf32>
    "tpu.trace_stop"() : () -> ()
    %68 = arith.truncf %67 : vector<4x8x8xf32> to vector<4x8x8xbf16>
    %c0_27 = arith.constant 0 : index
    %c0_28 = arith.constant 0 : index
    %c0_29 = arith.constant 0 : index
    %c0_30 = arith.constant 0 : index
    %69 = vector.load %arg7[%c0_27, %c0_28, %c0_29, %c0_30] : memref<1x4x8x32xbf16, #tpu.memory_space<vmem>>, vector<1x4x8x32xbf16>
    %70 = vector.shape_cast %69 : vector<1x4x8x32xbf16> to vector<4x8x32xbf16>
    "tpu.trace_start"() <{level = 10 : i32, message = "hsd,hde->hse"}> : () -> ()
    %cst_31 = arith.constant dense<0.000000e+00> : vector<4x8x32xf32>
    %71 = tpu.matmul %68, %70, %cst_31 {dimension_numbers = #tpu.dot_dimension_numbers<[2], [1], [1], [2], [0, 0, 0, 1, 1, 2], [0], [0]>} : vector<4x8x8xbf16>, vector<4x8x32xbf16>, vector<4x8x32xf32> -> vector<4x8x32xf32>
    "tpu.trace_stop"() : () -> ()
    %cst_32 = arith.constant dense<0.000000e+00> : vector<8x32xf32>
    %72 = vector.multi_reduction <add>, %71, %cst_32 [0] : vector<4x8x32xf32> to vector<8x32xf32>
    %c0_33 = arith.constant 0 : index
    %c0_34 = arith.constant 0 : index
    %c0_35 = arith.constant 0 : index
    %73 = vector.load %arg8[%c0_33, %c0_34, %c0_35] : memref<1x1x32xf32, #tpu.memory_space<vmem>>, vector<1x1x32xf32>
    %74 = vector.shape_cast %73 : vector<1x1x32xf32> to vector<1x32xf32>
    %75 = vector.broadcast %74 : vector<1x32xf32> to vector<8x32xf32>
    %76 = arith.addf %72, %75 : vector<8x32xf32>
    %77 = arith.addf %4, %76 : vector<8x32xf32>
    %c0_36 = arith.constant 0 : index
    %c0_37 = arith.constant 0 : index
    %c0_38 = arith.constant 0 : index
    %78 = vector.load %arg9[%c0_36, %c0_37, %c0_38] : memref<1x1x32xf32, #tpu.memory_space<vmem>>, vector<1x1x32xf32>
    %79 = vector.shape_cast %78 : vector<1x1x32xf32> to vector<1x32xf32>
    %c0_39 = arith.constant 0 : index
    %c0_40 = arith.constant 0 : index
    %c0_41 = arith.constant 0 : index
    %80 = vector.load %arg10[%c0_39, %c0_40, %c0_41] : memref<1x1x32xf32, #tpu.memory_space<vmem>>, vector<1x1x32xf32>
    %81 = vector.shape_cast %80 : vector<1x1x32xf32> to vector<1x32xf32>
    %cst_42 = arith.constant dense<0.000000e+00> : vector<8xf32>
    %82 = vector.multi_reduction <add>, %77, %cst_42 [1] : vector<8x32xf32> to vector<8xf32>
    %83 = vector.shape_cast %82 : vector<8xf32> to vector<8x1xf32>
    %cst_43 = arith.constant 3.200000e+01 : f32
    %84 = vector.broadcast %cst_43 : f32 to vector<8x1xf32>
    %85 = arith.divf %83, %84 : vector<8x1xf32>
    %86 = vector.broadcast %85 : vector<8x1xf32> to vector<8x32xf32>
    %87 = arith.subf %77, %86 : vector<8x32xf32>
    %88 = arith.mulf %87, %87 : vector<8x32xf32>
    %cst_44 = arith.constant dense<0.000000e+00> : vector<8xf32>
    %89 = vector.multi_reduction <add>, %88, %cst_44 [1] : vector<8x32xf32> to vector<8xf32>
    %90 = vector.shape_cast %89 : vector<8xf32> to vector<8x1xf32>
    %cst_45 = arith.constant 3.200000e+01 : f32
    %91 = vector.broadcast %cst_45 : f32 to vector<8x1xf32>
    %92 = arith.divf %90, %91 : vector<8x1xf32>
    %93 = vector.broadcast %85 : vector<8x1xf32> to vector<8x32xf32>
    %94 = arith.subf %77, %93 : vector<8x32xf32>
    %cst_46 = arith.constant 9.99999974E-6 : f32
    %95 = vector.broadcast %cst_46 : f32 to vector<8x1xf32>
    %96 = arith.addf %92, %95 : vector<8x1xf32>
    %97 = math.rsqrt %96 : vector<8x1xf32>
    %98 = vector.broadcast %97 : vector<8x1xf32> to vector<8x32xf32>
    %99 = arith.mulf %94, %98 : vector<8x32xf32>
    %100 = vector.broadcast %79 : vector<1x32xf32> to vector<8x32xf32>
    %101 = arith.mulf %99, %100 : vector<8x32xf32>
    %102 = vector.broadcast %81 : vector<1x32xf32> to vector<8x32xf32>
    %103 = arith.addf %101, %102 : vector<8x32xf32>
    %104 = arith.truncf %103 : vector<8x32xf32> to vector<8x32xbf16>
    %c0_47 = arith.constant 0 : index
    %c0_48 = arith.constant 0 : index
    %c0_49 = arith.constant 0 : index
    %105 = vector.load %arg11[%c0_47, %c0_48, %c0_49] : memref<1x32x128xbf16, #tpu.memory_space<vmem>>, vector<1x32x128xbf16>
    %106 = vector.shape_cast %105 : vector<1x32x128xbf16> to vector<32x128xbf16>
    %cst_50 = arith.constant dense<0.000000e+00> : vector<8x128xf32>
    %107 = tpu.matmul %104, %106, %cst_50 {dimension_numbers = #tpu.dot_dimension_numbers<[1], [0], [0], [1], [0, 0, 1, 1], [], []>} : vector<8x32xbf16>, vector<32x128xbf16>, vector<8x128xf32> -> vector<8x128xf32>
    %c0_51 = arith.constant 0 : index
    %c0_52 = arith.constant 0 : index
    %c0_53 = arith.constant 0 : index
    %108 = vector.load %arg12[%c0_51, %c0_52, %c0_53] : memref<1x1x128xf32, #tpu.memory_space<vmem>>, vector<1x1x128xf32>
    %109 = vector.shape_cast %108 : vector<1x1x128xf32> to vector<1x128xf32>
    %110 = vector.broadcast %109 : vector<1x128xf32> to vector<8x128xf32>
    %111 = arith.addf %107, %110 : vector<8x128xf32>
    %cst_54 = arith.constant 5.000000e-01 : f32
    %112 = vector.broadcast %cst_54 : f32 to vector<8x128xf32>
    %113 = arith.mulf %112, %111 : vector<8x128xf32>
    %cst_55 = arith.constant 0.707106769 : f32
    %114 = vector.broadcast %cst_55 : f32 to vector<8x128xf32>
    %115 = arith.mulf %111, %114 : vector<8x128xf32>
    %116 = math.erf %115 : vector<8x128xf32>
    %cst_56 = arith.constant 1.000000e+00 : f32
    %117 = vector.broadcast %cst_56 : f32 to vector<8x128xf32>
    %118 = arith.addf %117, %116 : vector<8x128xf32>
    %119 = arith.mulf %113, %118 : vector<8x128xf32>
    %120 = arith.truncf %119 : vector<8x128xf32> to vector<8x128xbf16>
    %c0_57 = arith.constant 0 : index
    %c0_58 = arith.constant 0 : index
    %c0_59 = arith.constant 0 : index
    %121 = vector.load %arg13[%c0_57, %c0_58, %c0_59] : memref<1x128x32xbf16, #tpu.memory_space<vmem>>, vector<1x128x32xbf16>
    %122 = vector.shape_cast %121 : vector<1x128x32xbf16> to vector<128x32xbf16>
    %cst_60 = arith.constant dense<0.000000e+00> : vector<8x32xf32>
    %123 = tpu.matmul %120, %122, %cst_60 {dimension_numbers = #tpu.dot_dimension_numbers<[1], [0], [0], [1], [0, 0, 1, 1], [], []>} : vector<8x128xbf16>, vector<128x32xbf16>, vector<8x32xf32> -> vector<8x32xf32>
    %c0_61 = arith.constant 0 : index
    %c0_62 = arith.constant 0 : index
    %c0_63 = arith.constant 0 : index
    %124 = vector.load %arg14[%c0_61, %c0_62, %c0_63] : memref<1x1x32xf32, #tpu.memory_space<vmem>>, vector<1x1x32xf32>
    %125 = vector.shape_cast %124 : vector<1x1x32xf32> to vector<1x32xf32>
    %126 = vector.broadcast %125 : vector<1x32xf32> to vector<8x32xf32>
    %127 = arith.addf %123, %126 : vector<8x32xf32>
    %128 = arith.addf %77, %127 : vector<8x32xf32>
    %c0_64 = arith.constant 0 : index
    %c0_65 = arith.constant 0 : index
    %c0_66 = arith.constant 0 : index
    %129 = vector.load %arg15[%c0_64, %c0_65, %c0_66] : memref<1x8x32xf32, #tpu.memory_space<vmem>>, vector<1x8x32xf32>
    %130 = vector.shape_cast %129 : vector<1x8x32xf32> to vector<8x32xf32>
    %131 = vector.shape_cast %128 : vector<8x32xf32> to vector<1x8x32xf32>
    tpu.vector_store %arg15[%c0_64, %c0_65, %c0_66], %131 {strides = array<i32>} : memref<1x8x32xf32, #tpu.memory_space<vmem>>, vector<1x8x32xf32>,
    return
  }
  func.func @transform_0(%arg0: i32, %arg1: i32) -> (i32, i32, i32) {
    %c0_i32 = arith.constant 0 : i32
    %c0_i32_0 = arith.constant 0 : i32
    %c0_i32_1 = arith.constant 0 : i32
    return %arg0, %c0_i32, %c0_i32_0 : i32, i32, i32
  }
  func.func @transform_1(%arg0: i32, %arg1: i32) -> (i32, i32, i32) {
    %c0_i32 = arith.constant 0 : i32
    %c0_i32_0 = arith.constant 0 : i32
    %c0_i32_1 = arith.constant 0 : i32
    return %arg1, %c0_i32, %c0_i32_0 : i32, i32, i32
  }
  func.func @transform_2(%arg0: i32, %arg1: i32) -> (i32, i32, i32) {
    %c0_i32 = arith.constant 0 : i32
    %c0_i32_0 = arith.constant 0 : i32
    %c0_i32_1 = arith.constant 0 : i32
    return %arg1, %c0_i32, %c0_i32_0 : i32, i32, i32
  }
  func.func @transform_3(%arg0: i32, %arg1: i32) -> (i32, i32, i32, i32) {
    %c0_i32 = arith.constant 0 : i32
    %c0_i32_0 = arith.constant 0 : i32
    %c0_i32_1 = arith.constant 0 : i32
    %c0_i32_2 = arith.constant 0 : i32
    return %arg1, %c0_i32, %c0_i32_0, %c0_i32_1 : i32, i32, i32, i32
  }
  func.func @transform_4(%arg0: i32, %arg1: i32) -> (i32, i32, i32, i32) {
    %c0_i32 = arith.constant 0 : i32
    %c0_i32_0 = arith.constant 0 : i32
    %c0_i32_1 = arith.constant 0 : i32
    %c0_i32_2 = arith.constant 0 : i32
    return %arg1, %c0_i32, %c0_i32_0, %c0_i32_1 : i32, i32, i32, i32
  }
  func.func @transform_5(%arg0: i32, %arg1: i32) -> (i32, i32, i32, i32) {
    %c0_i32 = arith.constant 0 : i32
    %c0_i32_0 = arith.constant 0 : i32
    %c0_i32_1 = arith.constant 0 : i32
    %c0_i32_2 = arith.constant 0 : i32
    return %arg1, %c0_i32, %c0_i32_0, %c0_i32_1 : i32, i32, i32, i32
  }
  func.func @transform_6(%arg0: i32, %arg1: i32) -> (i32, i32, i32) {
    %c0_i32 = arith.constant 0 : i32
    %c0_i32_0 = arith.constant 0 : i32
    %c0_i32_1 = arith.constant 0 : i32
    return %arg1, %c0_i32, %c0_i32_0 : i32, i32, i32
  }
  func.func @transform_7(%arg0: i32, %arg1: i32) -> (i32, i32, i32) {
    %c0_i32 = arith.constant 0 : i32
    %c0_i32_0 = arith.constant 0 : i32
    %c0_i32_1 = arith.constant 0 : i32
    return %arg1, %c0_i32, %c0_i32_0 : i32, i32, i32
  }
  func.func @transform_8(%arg0: i32, %arg1: i32) -> (i32, i32, i32) {
    %c0_i32 = arith.constant 0 : i32
    %c0_i32_0 = arith.constant 0 : i32
    %c0_i32_1 = arith.constant 0 : i32
    return %arg1, %c0_i32, %c0_i32_0 : i32, i32, i32
  }
  func.func @transform_9(%arg0: i32, %arg1: i32) -> (i32, i32, i32) {
    %c0_i32 = arith.constant 0 : i32
    %c0_i32_0 = arith.constant 0 : i32
    %c0_i32_1 = arith.constant 0 : i32
    return %arg1, %c0_i32, %c0_i32_0 : i32, i32, i32
  }
  func.func @transform_10(%arg0: i32, %arg1: i32) -> (i32, i32, i32) {
    %c0_i32 = arith.constant 0 : i32
    %c0_i32_0 = arith.constant 0 : i32
    %c0_i32_1 = arith.constant 0 : i32
    return %arg1, %c0_i32, %c0_i32_0 : i32, i32, i32
  }
  func.func @transform_11(%arg0: i32, %arg1: i32) -> (i32, i32, i32) {
    %c0_i32 = arith.constant 0 : i32
    %c0_i32_0 = arith.constant 0 : i32
    %c0_i32_1 = arith.constant 0 : i32
    return %arg1, %c0_i32, %c0_i32_0 : i32, i32, i32
  }
  func.func @transform_12(%arg0: i32, %arg1: i32) -> (i32, i32, i32) {
    %c0_i32 = arith.constant 0 : i32
    %c0_i32_0 = arith.constant 0 : i32
    %c0_i32_1 = arith.constant 0 : i32
    return %arg1, %c0_i32, %c0_i32_0 : i32, i32, i32
  }
  func.func @transform_13(%arg0: i32, %arg1: i32) -> (i32, i32, i32) {
    %c0_i32 = arith.constant 0 : i32
    %c0_i32_0 = arith.constant 0 : i32
    %c0_i32_1 = arith.constant 0 : i32
    return %arg0, %c0_i32, %c0_i32_0 : i32, i32, i32
  }
}

</mosaic_0001>

<llo_original>
// kernel: tpu_custom_call.1
$region0: #{tpu_custom_call.1}
  #allocation0 [shape = 'u32[]', space=smem, size = 0x4, offset = 0x4, fixed_abs, tag = 'smem constant byte address 0x4 - core index']
  #allocation1 [shape = 'u32[144,128]{1,0:T(1,128)}', space=vmem, size = 0x12000, scoped, tag = 'internal scratch']
  %s0 = inlined_call_operand.vmem [shape: f32[2,8,32], index: 0, kind: input, shape index: {}]
  %s1 = inlined_call_operand.vmem [shape: f32[2,1,32], index: 1, kind: input, shape index: {}]
  %s2 = inlined_call_operand.vmem [shape: f32[2,1,32], index: 2, kind: input, shape index: {}]
  %s3 = inlined_call_operand.vmem [shape: bf16[2,12,32,8], index: 3, kind: input, shape index: {}]
  %s4 = inlined_call_operand.vmem [shape: f32[2,12,1,8], index: 4, kind: input, shape index: {}]
  %s5 = inlined_call_operand.vmem [shape: bf16[2,4,8,32], index: 5, kind: input, shape index: {}]
  %s6 = inlined_call_operand.vmem [shape: f32[2,1,32], index: 6, kind: input, shape index: {}]
  %s7 = inlined_call_operand.vmem [shape: f32[2,1,32], index: 7, kind: input, shape index: {}]
  %s8 = inlined_call_operand.vmem [shape: f32[2,1,32], index: 8, kind: input, shape index: {}]
  %s9 = inlined_call_operand.vmem [shape: bf16[2,32,128], index: 9, kind: input, shape index: {}]
  %s10 = inlined_call_operand.vmem [shape: f32[2,1,128], index: 10, kind: input, shape index: {}]
  %s11 = inlined_call_operand.vmem [shape: bf16[2,128,32], index: 11, kind: input, shape index: {}]
  %s12 = inlined_call_operand.vmem [shape: f32[2,1,32], index: 12, kind: input, shape index: {}]
  %s13 = inlined_call_operand.hbm [shape: f32[2,8,32], index: 13, kind: output, shape index: {}]
  %s14 = sld [smem:[#allocation0]]
  $region89: #{tpu_custom_call.1} parent=0
    _
  %s16 = ssub.s32 1, %s14
  %s17 = scalar_select 0, %s16, %s14
  $region1: #{tpu_custom_call.1} parent=0
    #allocation2 [shape = 'u8[8192]{0}', space=vmem, size = 0x2000, scoped, tag = 'output window, operand 0']
    #allocation3 [shape = 's32[2]{0}', space=sflag, size = 0x8, scoped, tag = 'scoped memory for tpu_custom_call.1']
    %18 = vsyncpa [#allocation3], 0
    %s19 = scalar_lea.sflag [#allocation3], 1
    %20 = vsyncpa %s19, 0
    loop: start=0, step=1, limit=6
    $region2: #{tpu_custom_call.1} parent=1 // loop_pre_header
      _
    $region3: #{tpu_custom_call.1} parent=1 // loop_header
      %s22 = sphi 0, %s26
      %p23 = scmp.ge.s32.totalorder %s22, 6
      %s29 = sphi 0, %s41
      %s30 = sphi 0, %s37
      %s31 = sphi 0, %s29
      %s32 = sphi 0, %s30
      %s33 = sphi 0, %s31
      %s34 = sphi 0, %s32
      %s44 = sphi 0, %s46
      %s47 = sphi 0, %s44
      %s48 = sphi 0, %s47
      %s64 = sphi 0, %s48
      %s70 = sphi 0, %s72
      %s73 = sphi 0, %s70
      %s74 = sphi 0, %s73
      %s90 = sphi 0, %s74
      %s96 = sphi 0, %s98
      %s99 = sphi 0, %s96
      %s100 = sphi 0, %s99
      %s116 = sphi 0, %s100
      %s122 = sphi 0, %s124
      %s125 = sphi 0, %s122
      %s126 = sphi 0, %s125
      %s142 = sphi 0, %s126
      %s148 = sphi 0, %s150
      %s151 = sphi 0, %s148
      %s152 = sphi 0, %s151
      %s168 = sphi 0, %s152
      %s174 = sphi 0, %s176
      %s177 = sphi 0, %s174
      %s178 = sphi 0, %s177
      %s194 = sphi 0, %s178
      %s200 = sphi 0, %s202
      %s203 = sphi 0, %s200
      %s204 = sphi 0, %s203
      %s220 = sphi 0, %s204
      %s226 = sphi 0, %s228
      %s229 = sphi 0, %s226
      %s230 = sphi 0, %s229
      %s246 = sphi 0, %s230
      %s252 = sphi 0, %s254
      %s255 = sphi 0, %s252
      %s256 = sphi 0, %s255
      %s272 = sphi 0, %s256
      %s278 = sphi 0, %s280
      %s281 = sphi 0, %s278
      %s282 = sphi 0, %s281
      %s298 = sphi 0, %s282
      %s304 = sphi 0, %s306
      %s307 = sphi 0, %s304
      %s308 = sphi 0, %s307
      %s324 = sphi 0, %s308
      %s330 = sphi 0, %s332
      %s333 = sphi 0, %s330
      %s334 = sphi 0, %s333
      %s350 = sphi 0, %s334
      %s356 = sphi 0, %s358
      %s359 = sphi 0, %s356
      %s360 = sphi 0, %s359
      %s376 = sphi 0, %s360
      %s382 = sphi 0, %s384
      %s385 = sphi 0, %s382
      %s386 = sphi 0, %s385
      %s402 = sphi 0, %s386
    $region4: #{tpu_custom_call.1} parent=1 // loop_header_branch
      %25 = sbr.rel (%p23) target = $region8
    $region5: #{tpu_custom_call.1} parent=1 // loop_body
      %s27 = ssub.s32 %s22, 1
      %s28 = ssub.s32 %s22, 2
      %s35 = sadd.s32 1, %s30
      %p36 = scmp.ge.s32.totalorder %s35, 2
      %s37 = scalar_select %p36, 0, %s35
      %s38 = sadd.s32 1, %s29
      %s39 = scalar_select %p36, %s38, %s29
      %p40 = scmp.ge.s32.totalorder %s39, 2
      %s41 = scalar_select %p40, 0, %s39
      %s42 = ssub.s32 %s29, %s41
      %p43 = scmp.eq.s32.totalorder %s42, 0
      %s45 = sadd.s32 %s44, 1
      %s46 = scalar_select %p43, %s44, %s45
      %p49 = pneg %p43
      %p50 = scmp.eq.s32.totalorder %s22, 3
      %p51 = por %p49, %p50
      %p52 = scmp.ne.s32.totalorder %s44, %s47
      %p53 = scmp.eq.s32.totalorder %s22, 0
      %p54 = por %p52, %p53
      %p55 = scmp.ne.s32.totalorder %s44, %s47
      %p56 = scmp.eq.s32.totalorder %s27, 3
      %p57 = por %p55, %p56
      %p58 = scmp.ne.s32.totalorder %s47, %s48
      %p59 = scmp.eq.s32.totalorder %s27, 0
      %p60 = por %p58, %p59
      %p61 = scmp.ne.s32.totalorder %s47, %s48
      %p62 = scmp.eq.s32.totalorder %s28, 3
      %p63 = por %p61, %p62
      %p65 = scmp.ne.s32.totalorder %s48, %s64
      %p66 = scmp.eq.s32.totalorder %s28, 0
      %p67 = por %p65, %p66
      %s68 = ssub.s32 %s30, %s37
      %p69 = scmp.eq.s32.totalorder %s68, 0
      %s71 = sadd.s32 %s70, 1
      %s72 = scalar_select %p69, %s70, %s71
      %p75 = pneg %p69
      %p76 = scmp.eq.s32.totalorder %s22, 3
      %p77 = por %p75, %p76
      %p78 = scmp.ne.s32.totalorder %s70, %s73
      %p79 = scmp.eq.s32.totalorder %s22, 0
      %p80 = por %p78, %p79
      %p81 = scmp.ne.s32.totalorder %s70, %s73
      %p82 = scmp.eq.s32.totalorder %s27, 3
      %p83 = por %p81, %p82
      %p84 = scmp.ne.s32.totalorder %s73, %s74
      %p85 = scmp.eq.s32.totalorder %s27, 0
      %p86 = por %p84, %p85
      %p87 = scmp.ne.s32.totalorder %s73, %s74
      %p88 = scmp.eq.s32.totalorder %s28, 3
      %p89 = por %p87, %p88
      %p91 = scmp.ne.s32.totalorder %s74, %s90
      %p92 = scmp.eq.s32.totalorder %s28, 0
      %p93 = por %p91, %p92
      %s94 = ssub.s32 %s30, %s37
      %p95 = scmp.eq.s32.totalorder %s94, 0
      %s97 = sadd.s32 %s96, 1
      %s98 = scalar_select %p95, %s96, %s97
      %p101 = pneg %p95
      %p102 = scmp.eq.s32.totalorder %s22, 3
      %p103 = por %p101, %p102
      %p104 = scmp.ne.s32.totalorder %s96, %s99
      %p105 = scmp.eq.s32.totalorder %s22, 0
      %p106 = por %p104, %p105
      %p107 = scmp.ne.s32.totalorder %s96, %s99
      %p108 = scmp.eq.s32.totalorder %s27, 3
      %p109 = por %p107, %p108
      %p110 = scmp.ne.s32.totalorder %s99, %s100
      %p111 = scmp.eq.s32.totalorder %s27, 0
      %p112 = por %p110, %p111
      %p113 = scmp.ne.s32.totalorder %s99, %s100
      %p114 = scmp.eq.s32.totalorder %s28, 3
      %p115 = por %p113, %p114
      %p117 = scmp.ne.s32.totalorder %s100, %s116
      %p118 = scmp.eq.s32.totalorder %s28, 0
      %p119 = por %p117, %p118
      %s120 = ssub.s32 %s30, %s37
      %p121 = scmp.eq.s32.totalorder %s120, 0
      %s123 = sadd.s32 %s122, 1
      %s124 = scalar_select %p121, %s122, %s123
      %p127 = pneg %p121
      %p128 = scmp.eq.s32.totalorder %s22, 3
      %p129 = por %p127, %p128
      %p130 = scmp.ne.s32.totalorder %s122, %s125
      %p131 = scmp.eq.s32.totalorder %s22, 0
      %p132 = por %p130, %p131
      %p133 = scmp.ne.s32.totalorder %s122, %s125
      %p134 = scmp.eq.s32.totalorder %s27, 3
      %p135 = por %p133, %p134
      %p136 = scmp.ne.s32.totalorder %s125, %s126
      %p137 = scmp.eq.s32.totalorder %s27, 0
      %p138 = por %p136, %p137
      %p139 = scmp.ne.s32.totalorder %s125, %s126
      %p140 = scmp.eq.s32.totalorder %s28, 3
      %p141 = por %p139, %p140
      %p143 = scmp.ne.s32.totalorder %s126, %s142
      %p144 = scmp.eq.s32.totalorder %s28, 0
      %p145 = por %p143, %p144
      %s146 = ssub.s32 %s30, %s37
      %p147 = scmp.eq.s32.totalorder %s146, 0
      %s149 = sadd.s32 %s148, 1
      %s150 = scalar_select %p147, %s148, %s149
      %p153 = pneg %p147
      %p154 = scmp.eq.s32.totalorder %s22, 3
      %p155 = por %p153, %p154
      %p156 = scmp.ne.s32.totalorder %s148, %s151
      %p157 = scmp.eq.s32.totalorder %s22, 0
      %p158 = por %p156, %p157
      %p159 = scmp.ne.s32.totalorder %s148, %s151
      %p160 = scmp.eq.s32.totalorder %s27, 3
      %p161 = por %p159, %p160
      %p162 = scmp.ne.s32.totalorder %s151, %s152
      %p163 = scmp.eq.s32.totalorder %s27, 0
      %p164 = por %p162, %p163
      %p165 = scmp.ne.s32.totalorder %s151, %s152
      %p166 = scmp.eq.s32.totalorder %s28, 3
      %p167 = por %p165, %p166
      %p169 = scmp.ne.s32.totalorder %s152, %s168
      %p170 = scmp.eq.s32.totalorder %s28, 0
      %p171 = por %p169, %p170
      %s172 = ssub.s32 %s30, %s37
      %p173 = scmp.eq.s32.totalorder %s172, 0
      %s175 = sadd.s32 %s174, 1
      %s176 = scalar_select %p173, %s174, %s175
      %p179 = pneg %p173
      %p180 = scmp.eq.s32.totalorder %s22, 3
      %p181 = por %p179, %p180
      %p182 = scmp.ne.s32.totalorder %s174, %s177
      %p183 = scmp.eq.s32.totalorder %s22, 0
      %p184 = por %p182, %p183
      %p185 = scmp.ne.s32.totalorder %s174, %s177
      %p186 = scmp.eq.s32.totalorder %s27, 3
      %p187 = por %p185, %p186
      %p188 = scmp.ne.s32.totalorder %s177, %s178
      %p189 = scmp.eq.s32.totalorder %s27, 0
      %p190 = por %p188, %p189
      %p191 = scmp.ne.s32.totalorder %s177, %s178
      %p192 = scmp.eq.s32.totalorder %s28, 3
      %p193 = por %p191, %p192
      %p195 = scmp.ne.s32.totalorder %s178, %s194
      %p196 = scmp.eq.s32.totalorder %s28, 0
      %p197 = por %p195, %p196
      %s198 = ssub.s32 %s30, %s37
      %p199 = scmp.eq.s32.totalorder %s198, 0
      %s201 = sadd.s32 %s200, 1
      %s202 = scalar_select %p199, %s200, %s201
      %p205 = pneg %p199
      %p206 = scmp.eq.s32.totalorder %s22, 3
      %p207 = por %p205, %p206
      %p208 = scmp.ne.s32.totalorder %s200, %s203
      %p209 = scmp.eq.s32.totalorder %s22, 0
      %p210 = por %p208, %p209
      %p211 = scmp.ne.s32.totalorder %s200, %s203
      %p212 = scmp.eq.s32.totalorder %s27, 3
      %p213 = por %p211, %p212
      %p214 = scmp.ne.s32.totalorder %s203, %s204
      %p215 = scmp.eq.s32.totalorder %s27, 0
      %p216 = por %p214, %p215
      %p217 = scmp.ne.s32.totalorder %s203, %s204
      %p218 = scmp.eq.s32.totalorder %s28, 3
      %p219 = por %p217, %p218
      %p221 = scmp.ne.s32.totalorder %s204, %s220
      %p222 = scmp.eq.s32.totalorder %s28, 0
      %p223 = por %p221, %p222
      %s224 = ssub.s32 %s30, %s37
      %p225 = scmp.eq.s32.totalorder %s224, 0
      %s227 = sadd.s32 %s226, 1
      %s228 = scalar_select %p225, %s226, %s227
      %p231 = pneg %p225
      %p232 = scmp.eq.s32.totalorder %s22, 3
      %p233 = por %p231, %p232
      %p234 = scmp.ne.s32.totalorder %s226, %s229
      %p235 = scmp.eq.s32.totalorder %s22, 0
      %p236 = por %p234, %p235
      %p237 = scmp.ne.s32.totalorder %s226, %s229
      %p238 = scmp.eq.s32.totalorder %s27, 3
      %p239 = por %p237, %p238
      %p240 = scmp.ne.s32.totalorder %s229, %s230
      %p241 = scmp.eq.s32.totalorder %s27, 0
      %p242 = por %p240, %p241
      %p243 = scmp.ne.s32.totalorder %s229, %s230
      %p244 = scmp.eq.s32.totalorder %s28, 3
      %p245 = por %p243, %p244
      %p247 = scmp.ne.s32.totalorder %s230, %s246
      %p248 = scmp.eq.s32.totalorder %s28, 0
      %p249 = por %p247, %p248
      %s250 = ssub.s32 %s30, %s37
      %p251 = scmp.eq.s32.totalorder %s250, 0
      %s253 = sadd.s32 %s252, 1
      %s254 = scalar_select %p251, %s252, %s253
      %p257 = pneg %p251
      %p258 = scmp.eq.s32.totalorder %s22, 3
      %p259 = por %p257, %p258
      %p260 = scmp.ne.s32.totalorder %s252, %s255
      %p261 = scmp.eq.s32.totalorder %s22, 0
      %p262 = por %p260, %p261
      %p263 = scmp.ne.s32.totalorder %s252, %s255
      %p264 = scmp.eq.s32.totalorder %s27, 3
      %p265 = por %p263, %p264
      %p266 = scmp.ne.s32.totalorder %s255, %s256
      %p267 = scmp.eq.s32.totalorder %s27, 0
      %p268 = por %p266, %p267
      %p269 = scmp.ne.s32.totalorder %s255, %s256
      %p270 = scmp.eq.s32.totalorder %s28, 3
      %p271 = por %p269, %p270
      %p273 = scmp.ne.s32.totalorder %s256, %s272
      %p274 = scmp.eq.s32.totalorder %s28, 0
      %p275 = por %p273, %p274
      %s276 = ssub.s32 %s30, %s37
      %p277 = scmp.eq.s32.totalorder %s276, 0
      %s279 = sadd.s32 %s278, 1
      %s280 = scalar_select %p277, %s278, %s279
      %p283 = pneg %p277
      %p284 = scmp.eq.s32.totalorder %s22, 3
      %p285 = por %p283, %p284
      %p286 = scmp.ne.s32.totalorder %s278, %s281
      %p287 = scmp.eq.s32.totalorder %s22, 0
      %p288 = por %p286, %p287
      %p289 = scmp.ne.s32.totalorder %s278, %s281
      %p290 = scmp.eq.s32.totalorder %s27, 3
      %p291 = por %p289, %p290
      %p292 = scmp.ne.s32.totalorder %s281, %s282
      %p293 = scmp.eq.s32.totalorder %s27, 0
      %p294 = por %p292, %p293
      %p295 = scmp.ne.s32.totalorder %s281, %s282
      %p296 = scmp.eq.s32.totalorder %s28, 3
      %p297 = por %p295, %p296
      %p299 = scmp.ne.s32.totalorder %s282, %s298
      %p300 = scmp.eq.s32.totalorder %s28, 0
      %p301 = por %p299, %p300
      %s302 = ssub.s32 %s30, %s37
      %p303 = scmp.eq.s32.totalorder %s302, 0
      %s305 = sadd.s32 %s304, 1
      %s306 = scalar_select %p303, %s304, %s305
      %p309 = pneg %p303
      %p310 = scmp.eq.s32.totalorder %s22, 3
      %p311 = por %p309, %p310
      %p312 = scmp.ne.s32.totalorder %s304, %s307
      %p313 = scmp.eq.s32.totalorder %s22, 0
      %p314 = por %p312, %p313
      %p315 = scmp.ne.s32.totalorder %s304, %s307
      %p316 = scmp.eq.s32.totalorder %s27, 3
      %p317 = por %p315, %p316
      %p318 = scmp.ne.s32.totalorder %s307, %s308
      %p319 = scmp.eq.s32.totalorder %s27, 0
      %p320 = por %p318, %p319
      %p321 = scmp.ne.s32.totalorder %s307, %s308
      %p322 = scmp.eq.s32.totalorder %s28, 3
      %p323 = por %p321, %p322
      %p325 = scmp.ne.s32.totalorder %s308, %s324
      %p326 = scmp.eq.s32.totalorder %s28, 0
      %p327 = por %p325, %p326
      %s328 = ssub.s32 %s30, %s37
      %p329 = scmp.eq.s32.totalorder %s328, 0
      %s331 = sadd.s32 %s330, 1
      %s332 = scalar_select %p329, %s330, %s331
      %p335 = pneg %p329
      %p336 = scmp.eq.s32.totalorder %s22, 3
      %p337 = por %p335, %p336
      %p338 = scmp.ne.s32.totalorder %s330, %s333
      %p339 = scmp.eq.s32.totalorder %s22, 0
      %p340 = por %p338, %p339
      %p341 = scmp.ne.s32.totalorder %s330, %s333
      %p342 = scmp.eq.s32.totalorder %s27, 3
      %p343 = por %p341, %p342
      %p344 = scmp.ne.s32.totalorder %s333, %s334
      %p345 = scmp.eq.s32.totalorder %s27, 0
      %p346 = por %p344, %p345
      %p347 = scmp.ne.s32.totalorder %s333, %s334
      %p348 = scmp.eq.s32.totalorder %s28, 3
      %p349 = por %p347, %p348
      %p351 = scmp.ne.s32.totalorder %s334, %s350
      %p352 = scmp.eq.s32.totalorder %s28, 0
      %p353 = por %p351, %p352
      %s354 = ssub.s32 %s30, %s37
      %p355 = scmp.eq.s32.totalorder %s354, 0
      %s357 = sadd.s32 %s356, 1
      %s358 = scalar_select %p355, %s356, %s357
      %p361 = pneg %p355
      %p362 = scmp.eq.s32.totalorder %s22, 3
      %p363 = por %p361, %p362
      %p364 = scmp.ne.s32.totalorder %s356, %s359
      %p365 = scmp.eq.s32.totalorder %s22, 0
      %p366 = por %p364, %p365
      %p367 = scmp.ne.s32.totalorder %s356, %s359
      %p368 = scmp.eq.s32.totalorder %s27, 3
      %p369 = por %p367, %p368
      %p370 = scmp.ne.s32.totalorder %s359, %s360
      %p371 = scmp.eq.s32.totalorder %s27, 0
      %p372 = por %p370, %p371
      %p373 = scmp.ne.s32.totalorder %s359, %s360
      %p374 = scmp.eq.s32.totalorder %s28, 3
      %p375 = por %p373, %p374
      %p377 = scmp.ne.s32.totalorder %s360, %s376
      %p378 = scmp.eq.s32.totalorder %s28, 0
      %p379 = por %p377, %p378
      %s380 = ssub.s32 %s29, %s41
      %p381 = scmp.eq.s32.totalorder %s380, 0
      %s383 = sadd.s32 %s382, 1
      %s384 = scalar_select %p381, %s382, %s383
      %p387 = pneg %p381
      %p388 = scmp.eq.s32.totalorder %s22, 3
      %p389 = por %p387, %p388
      %p390 = scmp.ne.s32.totalorder %s382, %s385
      %p391 = scmp.eq.s32.totalorder %s22, 0
      %p392 = por %p390, %p391
      %p393 = scmp.ne.s32.totalorder %s382, %s385
      %p394 = scmp.eq.s32.totalorder %s27, 3
      %p395 = por %p393, %p394
      %p396 = scmp.ne.s32.totalorder %s385, %s386
      %p397 = scmp.eq.s32.totalorder %s27, 0
      %p398 = por %p396, %p397
      %p399 = scmp.ne.s32.totalorder %s385, %s386
      %p400 = scmp.eq.s32.totalorder %s28, 3
      %p401 = por %p399, %p400
      %p403 = scmp.ne.s32.totalorder %s386, %s402
      %p404 = scmp.eq.s32.totalorder %s28, 0
      %p405 = por %p403, %p404
      %p406 = scmp.le.s32.totalorder 1, %s22
      %p407 = scmp.lt.s32.totalorder %s22, 5
      %p408 = pnand %p406, %p407
      %p409 = pneg %p408
      // Predicated region
      $region9: #{tpu_custom_call.1} parent=5 // pred_check
        _
      $region10: #{tpu_custom_call.1} parent=5 // pred_check_branch
        %411 = sbr.rel (%p408) target = $region12
      $region11: #{tpu_custom_call.1} parent=5 // pred_region
        %s412 = ssub.s32 %s22, 1
      $region12: #{tpu_custom_call.1} parent=5 // pred_fallthru
        _
      %p413 = scmp.lt.s32.totalorder %s22, 4
      // Predicated region
      $region13: #{tpu_custom_call.1} parent=5 // pred_check
        %p414 = pneg %p413
      $region14: #{tpu_custom_call.1} parent=5 // pred_check_branch
        %416 = sbr.rel (%p414) target = $region16
      $region15: #{tpu_custom_call.1} parent=5 // pred_region
        // Predicated region
        $region17: #{tpu_custom_call.1} parent=15 // pred_check
          %p417 = pneg %p54
        $region18: #{tpu_custom_call.1} parent=15 // pred_check_branch
          %419 = sbr.rel (%p417) target = $region20
        $region19: #{tpu_custom_call.1} parent=15 // pred_region
          %p420 = scmp.lt.s32.totalorder %s29, 1
          %s421 = scalar_select %p420, %s29, 1
          %s422 = smul.addr %s421, 8
          %s423 = scalar_lea.vmem %s0, %s422
        $region20: #{tpu_custom_call.1} parent=15 // pred_fallthru
          _
        // Predicated region
        $region21: #{tpu_custom_call.1} parent=15 // pred_check
          %p424 = pneg %p80
        $region22: #{tpu_custom_call.1} parent=15 // pred_check_branch
          %426 = sbr.rel (%p424) target = $region24
        $region23: #{tpu_custom_call.1} parent=15 // pred_region
          %p427 = scmp.lt.s32.totalorder %s30, 1
          %s428 = scalar_select %p427, %s30, 1
          %s429 = scalar_lea.vmem %s1, %s428
        $region24: #{tpu_custom_call.1} parent=15 // pred_fallthru
          _
        // Predicated region
        $region25: #{tpu_custom_call.1} parent=15 // pred_check
          %p430 = pneg %p106
        $region26: #{tpu_custom_call.1} parent=15 // pred_check_branch
          %432 = sbr.rel (%p430) target = $region28
        $region27: #{tpu_custom_call.1} parent=15 // pred_region
          %p433 = scmp.lt.s32.totalorder %s30, 1
          %s434 = scalar_select %p433, %s30, 1
          %s435 = scalar_lea.vmem %s2, %s434
        $region28: #{tpu_custom_call.1} parent=15 // pred_fallthru
          _
        // Predicated region
        $region29: #{tpu_custom_call.1} parent=15 // pred_check
          %p436 = pneg %p132
        $region30: #{tpu_custom_call.1} parent=15 // pred_check_branch
          %438 = sbr.rel (%p436) target = $region32
        $region31: #{tpu_custom_call.1} parent=15 // pred_region
          %p439 = scmp.lt.s32.totalorder %s30, 1
          %s440 = scalar_select %p439, %s30, 1
          %s441 = smul.addr %s440, 48
          %s442 = smul.addr %s441, 4
          %s443 = scalar_lea.vmem %s3, %s442
        $region32: #{tpu_custom_call.1} parent=15 // pred_fallthru
          _
        // Predicated region
        $region33: #{tpu_custom_call.1} parent=15 // pred_check
          %p444 = pneg %p158
        $region34: #{tpu_custom_call.1} parent=15 // pred_check_branch
          %446 = sbr.rel (%p444) target = $region36
        $region35: #{tpu_custom_call.1} parent=15 // pred_region
          %p447 = scmp.lt.s32.totalorder %s30, 1
          %s448 = scalar_select %p447, %s30, 1
          %s449 = smul.addr %s448, 12
          %s450 = scalar_lea.vmem %s4, %s449
        $region36: #{tpu_custom_call.1} parent=15 // pred_fallthru
          _
        // Predicated region
        $region37: #{tpu_custom_call.1} parent=15 // pred_check
          %p451 = pneg %p184
        $region38: #{tpu_custom_call.1} parent=15 // pred_check_branch
          %453 = sbr.rel (%p451) target = $region40
        $region39: #{tpu_custom_call.1} parent=15 // pred_region
          %p454 = scmp.lt.s32.totalorder %s30, 1
          %s455 = scalar_select %p454, %s30, 1
          %s456 = smul.addr %s455, 4
          %s457 = smul.addr %s456, 4
          %s458 = scalar_lea.vmem %s5, %s457
        $region40: #{tpu_custom_call.1} parent=15 // pred_fallthru
          _
        // Predicated region
        $region41: #{tpu_custom_call.1} parent=15 // pred_check
          %p459 = pneg %p210
        $region42: #{tpu_custom_call.1} parent=15 // pred_check_branch
          %461 = sbr.rel (%p459) target = $region44
        $region43: #{tpu_custom_call.1} parent=15 // pred_region
          %p462 = scmp.lt.s32.totalorder %s30, 1
          %s463 = scalar_select %p462, %s30, 1
          %s464 = scalar_lea.vmem %s6, %s463
        $region44: #{tpu_custom_call.1} parent=15 // pred_fallthru
          _
        // Predicated region
        $region45: #{tpu_custom_call.1} parent=15 // pred_check
          %p465 = pneg %p236
        $region46: #{tpu_custom_call.1} parent=15 // pred_check_branch
          %467 = sbr.rel (%p465) target = $region48
        $region47: #{tpu_custom_call.1} parent=15 // pred_region
          %p468 = scmp.lt.s32.totalorder %s30, 1
          %s469 = scalar_select %p468, %s30, 1
          %s470 = scalar_lea.vmem %s7, %s469
        $region48: #{tpu_custom_call.1} parent=15 // pred_fallthru
          _
        // Predicated region
        $region49: #{tpu_custom_call.1} parent=15 // pred_check
          %p471 = pneg %p262
        $region50: #{tpu_custom_call.1} parent=15 // pred_check_branch
          %473 = sbr.rel (%p471) target = $region52
        $region51: #{tpu_custom_call.1} parent=15 // pred_region
          %p474 = scmp.lt.s32.totalorder %s30, 1
          %s475 = scalar_select %p474, %s30, 1
          %s476 = scalar_lea.vmem %s8, %s475
        $region52: #{tpu_custom_call.1} parent=15 // pred_fallthru
          _
        // Predicated region
        $region53: #{tpu_custom_call.1} parent=15 // pred_check
          %p477 = pneg %p288
        $region54: #{tpu_custom_call.1} parent=15 // pred_check_branch
          %479 = sbr.rel (%p477) target = $region56
        $region55: #{tpu_custom_call.1} parent=15 // pred_region
          %p480 = scmp.lt.s32.totalorder %s30, 1
          %s481 = scalar_select %p480, %s30, 1
          %s482 = smul.addr %s481, 4
          %s483 = smul.addr %s482, 4
          %s484 = scalar_lea.vmem %s9, %s483
        $region56: #{tpu_custom_call.1} parent=15 // pred_fallthru
          _
        // Predicated region
        $region57: #{tpu_custom_call.1} parent=15 // pred_check
          %p485 = pneg %p314
        $region58: #{tpu_custom_call.1} parent=15 // pred_check_branch
          %487 = sbr.rel (%p485) target = $region60
        $region59: #{tpu_custom_call.1} parent=15 // pred_region
          %p488 = scmp.lt.s32.totalorder %s30, 1
          %s489 = scalar_select %p488, %s30, 1
          %s490 = scalar_lea.vmem %s10, %s489
        $region60: #{tpu_custom_call.1} parent=15 // pred_fallthru
          _
        // Predicated region
        $region61: #{tpu_custom_call.1} parent=15 // pred_check
          %p491 = pneg %p340
        $region62: #{tpu_custom_call.1} parent=15 // pred_check_branch
          %493 = sbr.rel (%p491) target = $region64
        $region63: #{tpu_custom_call.1} parent=15 // pred_region
          %p494 = scmp.lt.s32.totalorder %s30, 1
          %s495 = scalar_select %p494, %s30, 1
          %s496 = smul.addr %s495, 16
          %s497 = smul.addr %s496, 4
          %s498 = scalar_lea.vmem %s11, %s497
        $region64: #{tpu_custom_call.1} parent=15 // pred_fallthru
          _
        // Predicated region
        $region65: #{tpu_custom_call.1} parent=15 // pred_check
          %p499 = pneg %p366
        $region66: #{tpu_custom_call.1} parent=15 // pred_check_branch
          %501 = sbr.rel (%p499) target = $region68
        $region67: #{tpu_custom_call.1} parent=15 // pred_region
          %p502 = scmp.lt.s32.totalorder %s30, 1
          %s503 = scalar_select %p502, %s30, 1
          %s504 = scalar_lea.vmem %s12, %s503
        $region68: #{tpu_custom_call.1} parent=15 // pred_fallthru
          _
      $region16: #{tpu_custom_call.1} parent=5 // pred_fallthru
        _
      %p505 = scmp.le.s32.totalorder 1, %s22
      %p506 = scmp.lt.s32.totalorder %s22, 5
      %p507 = pnand %p505, %p506
      %p508 = pneg %p507
      // Predicated region
      $region69: #{tpu_custom_call.1} parent=5 // pred_check
        _
      $region70: #{tpu_custom_call.1} parent=5 // pred_check_branch
        %510 = sbr.rel (%p507) target = $region72
      $region71: #{tpu_custom_call.1} parent=5 // pred_region
        %s511 = ssub.s32 %s22, 1
        %p512 = scmp.lt.s32.totalorder %s31, 1
        %s513 = scalar_select %p512, %s31, 1
        %s514 = smul.addr %s513, 8
        %s515 = scalar_lea.vmem %s0, %s514
        %p516 = pneg %p60
        %p517 = pneg %p57
        %p518 = scmp.lt.s32.totalorder %s32, 1
        %s519 = scalar_select %p518, %s32, 1
        %s520 = scalar_lea.vmem %s1, %s519
        %p521 = pneg %p86
        %p522 = pneg %p83
        %p523 = scmp.lt.s32.totalorder %s32, 1
        %s524 = scalar_select %p523, %s32, 1
        %s525 = scalar_lea.vmem %s2, %s524
        %p526 = pneg %p112
        %p527 = pneg %p109
        %p528 = scmp.lt.s32.totalorder %s32, 1
        %s529 = scalar_select %p528, %s32, 1
        %s530 = smul.addr %s529, 48
        %s531 = smul.addr %s530, 4
        %s532 = scalar_lea.vmem %s3, %s531
        %p533 = pneg %p138
        %p534 = pneg %p135
        %p535 = scmp.lt.s32.totalorder %s32, 1
        %s536 = scalar_select %p535, %s32, 1
        %s537 = smul.addr %s536, 12
        %s538 = scalar_lea.vmem %s4, %s537
        %p539 = pneg %p164
        %p540 = pneg %p161
        %p541 = scmp.lt.s32.totalorder %s32, 1
        %s542 = scalar_select %p541, %s32, 1
        %s543 = smul.addr %s542, 4
        %s544 = smul.addr %s543, 4
        %s545 = scalar_lea.vmem %s5, %s544
        %p546 = pneg %p190
        %p547 = pneg %p187
        %p548 = scmp.lt.s32.totalorder %s32, 1
        %s549 = scalar_select %p548, %s32, 1
        %s550 = scalar_lea.vmem %s6, %s549
        %p551 = pneg %p216
        %p552 = pneg %p213
        %p553 = scmp.lt.s32.totalorder %s32, 1
        %s554 = scalar_select %p553, %s32, 1
        %s555 = scalar_lea.vmem %s7, %s554
        %p556 = pneg %p242
        %p557 = pneg %p239
        %p558 = scmp.lt.s32.totalorder %s32, 1
        %s559 = scalar_select %p558, %s32, 1
        %s560 = scalar_lea.vmem %s8, %s559
        %p561 = pneg %p268
        %p562 = pneg %p265
        %p563 = scmp.lt.s32.totalorder %s32, 1
        %s564 = scalar_select %p563, %s32, 1
        %s565 = smul.addr %s564, 4
        %s566 = smul.addr %s565, 4
        %s567 = scalar_lea.vmem %s9, %s566
        %p568 = pneg %p294
        %p569 = pneg %p291
        %p570 = scmp.lt.s32.totalorder %s32, 1
        %s571 = scalar_select %p570, %s32, 1
        %s572 = scalar_lea.vmem %s10, %s571
        %p573 = pneg %p320
        %p574 = pneg %p317
        %p575 = scmp.lt.s32.totalorder %s32, 1
        %s576 = scalar_select %p575, %s32, 1
        %s577 = smul.addr %s576, 16
        %s578 = smul.addr %s577, 4
        %s579 = scalar_lea.vmem %s11, %s578
        %p580 = pneg %p346
        %p581 = pneg %p343
        %p582 = scmp.lt.s32.totalorder %s32, 1
        %s583 = scalar_select %p582, %s32, 1
        %s584 = scalar_lea.vmem %s12, %s583
        %p585 = pneg %p372
        %p586 = pneg %p369
        %p587 = pneg %p398
        %p588 = pneg %p395
        %s589 = sand.u32 %s385, 1
        %s590 = scalar_lea.sflag [#allocation3], %s589
        %s591 = sand.u32 %s385, 1
        %s592 = smul.addr %s591, 8
        %s593 = scalar_lea.vmem [#allocation2], %s592
        %p594 = scmp.lt.s32.totalorder %s31, 1
        %s595 = scalar_select %p594, %s31, 1
        %s596 = smul.addr %s595, 8
        %s597 = scalar_lea.vmem %s0, %s596
        %p598 = scmp.lt.s32.totalorder %s32, 1
        %s599 = scalar_select %p598, %s32, 1
        %s600 = scalar_lea.vmem %s1, %s599
        %p601 = scmp.lt.s32.totalorder %s32, 1
        %s602 = scalar_select %p601, %s32, 1
        %s603 = scalar_lea.vmem %s2, %s602
        %p604 = scmp.lt.s32.totalorder %s32, 1
        %s605 = scalar_select %p604, %s32, 1
        %s606 = smul.addr %s605, 48
        %s607 = smul.addr %s606, 4
        %s608 = scalar_lea.vmem %s3, %s607
        %p609 = scmp.lt.s32.totalorder %s32, 1
        %s610 = scalar_select %p609, %s32, 1
        %s611 = smul.addr %s610, 12
        %s612 = scalar_lea.vmem %s4, %s611
        %p613 = scmp.lt.s32.totalorder %s32, 1
        %s614 = scalar_select %p613, %s32, 1
        %s615 = smul.addr %s614, 4
        %s616 = smul.addr %s615, 4
        %s617 = scalar_lea.vmem %s5, %s616
        %p618 = scmp.lt.s32.totalorder %s32, 1
        %s619 = scalar_select %p618, %s32, 1
        %s620 = scalar_lea.vmem %s6, %s619
        %p621 = scmp.lt.s32.totalorder %s32, 1
        %s622 = scalar_select %p621, %s32, 1
        %s623 = scalar_lea.vmem %s7, %s622
        %p624 = scmp.lt.s32.totalorder %s32, 1
        %s625 = scalar_select %p624, %s32, 1
        %s626 = scalar_lea.vmem %s8, %s625
        %p627 = scmp.lt.s32.totalorder %s32, 1
        %s628 = scalar_select %p627, %s32, 1
        %s629 = smul.addr %s628, 4
        %s630 = smul.addr %s629, 4
        %s631 = scalar_lea.vmem %s9, %s630
        %p632 = scmp.lt.s32.totalorder %s32, 1
        %s633 = scalar_select %p632, %s32, 1
        %s634 = scalar_lea.vmem %s10, %s633
        %p635 = scmp.lt.s32.totalorder %s32, 1
        %s636 = scalar_select %p635, %s32, 1
        %s637 = smul.addr %s636, 16
        %s638 = smul.addr %s637, 4
        %s639 = scalar_lea.vmem %s11, %s638
        %p640 = scmp.lt.s32.totalorder %s32, 1
        %s641 = scalar_select %p640, %s32, 1
        %s642 = scalar_lea.vmem %s12, %s641
        %p644 = scmp.eq.s32.totalorder %s32, 0
        // Predicated region
        $region73: #{tpu_custom_call.1} parent=71 // pred_check
          %p645 = pneg %p644
        $region74: #{tpu_custom_call.1} parent=71 // pred_check_branch
          %647 = sbr.rel (%p645) target = $region76
        $region75: #{tpu_custom_call.1} parent=71 // pred_region
          %v648 = vld [vmem:[%s597] sm:$0xff]
          %vm649 = vcmask 261120
          %650 = vst.msk [vmem:[%s593] sm:$0xff] %vm649, %v648
        $region76: #{tpu_custom_call.1} parent=71 // pred_fallthru
          _
        %v651 = vld [vmem:[%s593] sm:$0xff]
        %v652 = vld [vmem:[%s600] sm:$0x1]
        %v653 = vld [vmem:[%s603] sm:$0x1]
        %vm654 = vcmask 261120
        %v655 = vsel %vm654, %v651, 0.0
        %656 = vadd.xlane.f32.xlu0 %v655
        %v657 = vpop.xlane.xlu0 %656
        %v658 = vrcp.pop 32.0
        %v659 = vmul.f32 %v657, %v658
        %v660 = vsub.f32 %v651, %v659
        %v661 = vmul.f32 %v660, %v660
        %v662 = vsel %vm654, %v661, 0.0
        %663 = vadd.xlane.f32.xlu0 %v662
        %v664 = vpop.xlane.xlu0 %663
        %v665 = vmul.f32 %v664, %v658
        %v666 = vadd.f32 %v665, 1e-05
        %v667 = vrsqrt.pop %v666
        %v668 = vmul.f32 %v660, %v667
        %v670 = vlaneseq
        %v671 = vshrl.u32 %v670, 7
        %v672 = vsub.s32 0, %v671
        %v673 = vrot.slane %v652, %v672
        %v675 = vmul.f32 %v668, %v673
        %v677 = vlaneseq
        %v678 = vshrl.u32 %v677, 7
        %v679 = vsub.s32 0, %v678
        %v680 = vrot.slane %v653, %v679
        %v682 = vadd.f32 %v675, %v680
        %v683 = vpack.c.bf16 %v682, %v682
        %v684 = vld [vmem:[%s608] sm:$0xf]
        %v685 = vld [vmem:[%s608 + $0x4] sm:$0xf]
        %v686 = vld [vmem:[%s608 + $0x8] sm:$0xf]
        %v687 = vld [vmem:[%s608 + $0xc] sm:$0xf]
        %v688 = vld [vmem:[%s608 + $0x10] sm:$0xf]
        %v689 = vld [vmem:[%s608 + $0x14] sm:$0xf]
        %v690 = vld [vmem:[%s608 + $0x18] sm:$0xf]
        %v691 = vld [vmem:[%s608 + $0x1c] sm:$0xf]
        %v692 = vld [vmem:[%s608 + $0x20] sm:$0xf]
        %v693 = vld [vmem:[%s608 + $0x24] sm:$0xf]
        %v694 = vld [vmem:[%s608 + $0x28] sm:$0xf]
        %v695 = vld [vmem:[%s608 + $0x2c] sm:$0xf]
        %v696 = vld [vmem:[%s608 + $0x30] sm:$0xf]
        %v697 = vld [vmem:[%s608 + $0x34] sm:$0xf]
        %v698 = vld [vmem:[%s608 + $0x38] sm:$0xf]
        %v699 = vld [vmem:[%s608 + $0x3c] sm:$0xf]
        %v700 = vld [vmem:[%s608 + $0x40] sm:$0xf]
        %v701 = vld [vmem:[%s608 + $0x44] sm:$0xf]
        %v702 = vld [vmem:[%s608 + $0x48] sm:$0xf]
        %v703 = vld [vmem:[%s608 + $0x4c] sm:$0xf]
        %v704 = vld [vmem:[%s608 + $0x50] sm:$0xf]
        %v705 = vld [vmem:[%s608 + $0x54] sm:$0xf]
        %v706 = vld [vmem:[%s608 + $0x58] sm:$0xf]
        %v707 = vld [vmem:[%s608 + $0x5c] sm:$0xf]
        %v708 = vld [vmem:[%s608 + $0x60] sm:$0xf]
        %v709 = vld [vmem:[%s608 + $0x64] sm:$0xf]
        %v710 = vld [vmem:[%s608 + $0x68] sm:$0xf]
        %v711 = vld [vmem:[%s608 + $0x6c] sm:$0xf]
        %v712 = vld [vmem:[%s608 + $0x70] sm:$0xf]
        %v713 = vld [vmem:[%s608 + $0x74] sm:$0xf]
        %v714 = vld [vmem:[%s608 + $0x78] sm:$0xf]
        %v715 = vld [vmem:[%s608 + $0x7c] sm:$0xf]
        %v716 = vld [vmem:[%s608 + $0x80] sm:$0xf]
        %v717 = vld [vmem:[%s608 + $0x84] sm:$0xf]
        %v718 = vld [vmem:[%s608 + $0x88] sm:$0xf]
        %v719 = vld [vmem:[%s608 + $0x8c] sm:$0xf]
        %v720 = vld [vmem:[%s608 + $0x90] sm:$0xf]
        %v721 = vld [vmem:[%s608 + $0x94] sm:$0xf]
        %v722 = vld [vmem:[%s608 + $0x98] sm:$0xf]
        %v723 = vld [vmem:[%s608 + $0x9c] sm:$0xf]
        %v724 = vld [vmem:[%s608 + $0xa0] sm:$0xf]
        %v725 = vld [vmem:[%s608 + $0xa4] sm:$0xf]
        %v726 = vld [vmem:[%s608 + $0xa8] sm:$0xf]
        %v727 = vld [vmem:[%s608 + $0xac] sm:$0xf]
        %v728 = vld [vmem:[%s608 + $0xb0] sm:$0xf]
        %v729 = vld [vmem:[%s608 + $0xb4] sm:$0xf]
        %v730 = vld [vmem:[%s608 + $0xb8] sm:$0xf]
        %v731 = vld [vmem:[%s608 + $0xbc] sm:$0xf]
        %v732 = vld [vmem:[%s612] sm:$0x1]
        %v733 = vld [vmem:[%s612 + $0x1] sm:$0x1]
        %v734 = vld [vmem:[%s612 + $0x2] sm:$0x1]
        %v735 = vld [vmem:[%s612 + $0x3] sm:$0x1]
        %v736 = vld [vmem:[%s612 + $0x4] sm:$0x1]
        %v737 = vld [vmem:[%s612 + $0x5] sm:$0x1]
        %v738 = vld [vmem:[%s612 + $0x6] sm:$0x1]
        %v739 = vld [vmem:[%s612 + $0x7] sm:$0x1]
        %v740 = vld [vmem:[%s612 + $0x8] sm:$0x1]
        %v741 = vld [vmem:[%s612 + $0x9] sm:$0x1]
        %v742 = vld [vmem:[%s612 + $0xa] sm:$0x1]
        %v743 = vld [vmem:[%s612 + $0xb] sm:$0x1]
        %v756 = vlaneseq
        %v757 = vshrl.u32 %v756, 7
        %v758 = vsub.s32 0, %v757
        %v759 = vrot.slane %v732, %v758
        %v760 = vlaneseq
        %v761 = vshrl.u32 %v760, 7
        %v762 = vsub.s32 0, %v761
        %v763 = vrot.slane %v733, %v762
        %v764 = vlaneseq
        %v765 = vshrl.u32 %v764, 7
        %v766 = vsub.s32 0, %v765
        %v767 = vrot.slane %v734, %v766
        %v768 = vlaneseq
        %v769 = vshrl.u32 %v768, 7
        %v770 = vsub.s32 0, %v769
        %v771 = vrot.slane %v735, %v770
        %v772 = vlaneseq
        %v773 = vshrl.u32 %v772, 7
        %v774 = vsub.s32 0, %v773
        %v775 = vrot.slane %v736, %v774
        %v776 = vlaneseq
        %v777 = vshrl.u32 %v776, 7
        %v778 = vsub.s32 0, %v777
        %v779 = vrot.slane %v737, %v778
        %v780 = vlaneseq
        %v781 = vshrl.u32 %v780, 7
        %v782 = vsub.s32 0, %v781
        %v783 = vrot.slane %v738, %v782
        %v784 = vlaneseq
        %v785 = vshrl.u32 %v784, 7
        %v786 = vsub.s32 0, %v785
        %v787 = vrot.slane %v739, %v786
        %v788 = vlaneseq
        %v789 = vshrl.u32 %v788, 7
        %v790 = vsub.s32 0, %v789
        %v791 = vrot.slane %v740, %v790
        %v792 = vlaneseq
        %v793 = vshrl.u32 %v792, 7
        %v794 = vsub.s32 0, %v793
        %v795 = vrot.slane %v741, %v794
        %v796 = vlaneseq
        %v797 = vshrl.u32 %v796, 7
        %v798 = vsub.s32 0, %v797
        %v799 = vrot.slane %v742, %v798
        %v800 = vlaneseq
        %v801 = vshrl.u32 %v800, 7
        %v802 = vsub.s32 0, %v801
        %v803 = vrot.slane %v743, %v802
        %v820 = vunpack.c.l.b16 %v684
        %v821 = vunpack.c.l.b16 %v685
        %v822 = vunpack.c.l.b16 %v686
        %v823 = vunpack.c.l.b16 %v687
        %v824 = vpack.c.b16 %v821, %v820
        %v825 = vpack.c.b16 %v823, %v822
        %v829 = vsel %vm654, %v683, 0
        %831 = vmatprep.subr.bf16.mxu0 0
        %832 = vmatpush1.bf16.msra.mxu0 %v824
        %833 = vmatprep.subr.bf16.mxu0 0
        %834 = vmatpush1.bf16.msra.mxu0 %v825
        %835 = vmatprep.subr.bf16.mxu0 0
        %836 = vmatpush1.bf16.msra.mxu0 0
        %837 = vmatprep.subr.bf16.mxu0 0
        %838 = vmatpush1.bf16.msra.mxu0 0
        %839 = vmatprep.subr.bf16.mxu0 0
        %840 = vmatpush1.bf16.msra.mxu0 0
        %841 = vmatprep.subr.bf16.mxu0 0
        %842 = vmatpush1.bf16.msra.mxu0 0
        %843 = vmatprep.subr.bf16.mxu0 0
        %844 = vmatpush1.bf16.msra.mxu0 0
        %845 = vmatprep.subr.bf16.mxu0 0
        %846 = vmatpush1.bf16.msra.mxu0 0
        %847 = vmatprep.subr.bf16.mxu0 0
        %848 = vmatpush1.bf16.msra.mxu0 0
        %849 = vmatprep.subr.bf16.mxu0 0
        %850 = vmatpush1.bf16.msra.mxu0 0
        %851 = vmatprep.subr.bf16.mxu0 0
        %852 = vmatpush1.bf16.msra.mxu0 0
        %853 = vmatprep.subr.bf16.mxu0 0
        %854 = vmatpush1.bf16.msra.mxu0 0
        %855 = vmatprep.subr.bf16.mxu0 0
        %856 = vmatpush1.bf16.msra.mxu0 0
        %857 = vmatprep.subr.bf16.mxu0 0
        %858 = vmatpush1.bf16.msra.mxu0 0
        %859 = vmatprep.subr.bf16.mxu0 0
        %860 = vmatpush1.bf16.msra.mxu0 0
        %861 = vmatprep.subr.bf16.mxu0 0
        %862 = vmatpush1.bf16.msra.mxu0 0
        %863 = vmatprep.mubr.bf16.mxu0 0
        %864 = vmatmul.mubr.bf16.gmra.mrb[0].mxu0 %v829
        %v865 = vpop.f32.mrb[0].mxu0
        %v866 = vadd.f32 %v759, %v865
        %v867 = vpop.f32.mrb[0].mxu0
        %v868 = vpop.f32.mrb[0].mxu0
        %v869 = vpop.f32.mrb[0].mxu0
        %870 = vdwg.mxu0
        %v875 = vunpack.c.l.b16 %v688
        %v876 = vunpack.c.l.b16 %v689
        %v877 = vunpack.c.l.b16 %v690
        %v878 = vunpack.c.l.b16 %v691
        %v879 = vpack.c.b16 %v876, %v875
        %v880 = vpack.c.b16 %v878, %v877
        %883 = vmatprep.subr.bf16.mxu0 0
        %884 = vmatpush1.bf16.msra.mxu0 %v879
        %885 = vmatprep.subr.bf16.mxu0 0
        %886 = vmatpush1.bf16.msra.mxu0 %v880
        %887 = vmatprep.subr.bf16.mxu0 0
        %888 = vmatpush1.bf16.msra.mxu0 0
        %889 = vmatprep.subr.bf16.mxu0 0
        %890 = vmatpush1.bf16.msra.mxu0 0
        %891 = vmatprep.subr.bf16.mxu0 0
        %892 = vmatpush1.bf16.msra.mxu0 0
        %893 = vmatprep.subr.bf16.mxu0 0
        %894 = vmatpush1.bf16.msra.mxu0 0
        %895 = vmatprep.subr.bf16.mxu0 0
        %896 = vmatpush1.bf16.msra.mxu0 0
        %897 = vmatprep.subr.bf16.mxu0 0
        %898 = vmatpush1.bf16.msra.mxu0 0
        %899 = vmatprep.subr.bf16.mxu0 0
        %900 = vmatpush1.bf16.msra.mxu0 0
        %901 = vmatprep.subr.bf16.mxu0 0
        %902 = vmatpush1.bf16.msra.mxu0 0
        %903 = vmatprep.subr.bf16.mxu0 0
        %904 = vmatpush1.bf16.msra.mxu0 0
        %905 = vmatprep.subr.bf16.mxu0 0
        %906 = vmatpush1.bf16.msra.mxu0 0
        %907 = vmatprep.subr.bf16.mxu0 0
        %908 = vmatpush1.bf16.msra.mxu0 0
        %909 = vmatprep.subr.bf16.mxu0 0
        %910 = vmatpush1.bf16.msra.mxu0 0
        %911 = vmatprep.subr.bf16.mxu0 0
        %912 = vmatpush1.bf16.msra.mxu0 0
        %913 = vmatprep.subr.bf16.mxu0 0
        %914 = vmatpush1.bf16.msra.mxu0 0
        %915 = vmatprep.mubr.bf16.mxu0 0
        %916 = vmatmul.mubr.bf16.gmra.mrb[0].mxu0 %v829
        %v917 = vpop.f32.mrb[0].mxu0
        %v918 = vadd.f32 %v763, %v917
        %v919 = vpop.f32.mrb[0].mxu0
        %v920 = vpop.f32.mrb[0].mxu0
        %v921 = vpop.f32.mrb[0].mxu0
        %922 = vdwg.mxu0
        %v927 = vunpack.c.l.b16 %v692
        %v928 = vunpack.c.l.b16 %v693
        %v929 = vunpack.c.l.b16 %v694
        %v930 = vunpack.c.l.b16 %v695
        %v931 = vpack.c.b16 %v928, %v927
        %v932 = vpack.c.b16 %v930, %v929
        %935 = vmatprep.subr.bf16.mxu0 0
        %936 = vmatpush1.bf16.msra.mxu0 %v931
        %937 = vmatprep.subr.bf16.mxu0 0
        %938 = vmatpush1.bf16.msra.mxu0 %v932
        %939 = vmatprep.subr.bf16.mxu0 0
        %940 = vmatpush1.bf16.msra.mxu0 0
        %941 = vmatprep.subr.bf16.mxu0 0
        %942 = vmatpush1.bf16.msra.mxu0 0
        %943 = vmatprep.subr.bf16.mxu0 0
        %944 = vmatpush1.bf16.msra.mxu0 0
        %945 = vmatprep.subr.bf16.mxu0 0
        %946 = vmatpush1.bf16.msra.mxu0 0
        %947 = vmatprep.subr.bf16.mxu0 0
        %948 = vmatpush1.bf16.msra.mxu0 0
        %949 = vmatprep.subr.bf16.mxu0 0
        %950 = vmatpush1.bf16.msra.mxu0 0
        %951 = vmatprep.subr.bf16.mxu0 0
        %952 = vmatpush1.bf16.msra.mxu0 0
        %953 = vmatprep.subr.bf16.mxu0 0
        %954 = vmatpush1.bf16.msra.mxu0 0
        %955 = vmatprep.subr.bf16.mxu0 0
        %956 = vmatpush1.bf16.msra.mxu0 0
        %957 = vmatprep.subr.bf16.mxu0 0
        %958 = vmatpush1.bf16.msra.mxu0 0
        %959 = vmatprep.subr.bf16.mxu0 0
        %960 = vmatpush1.bf16.msra.mxu0 0
        %961 = vmatprep.subr.bf16.mxu0 0
        %962 = vmatpush1.bf16.msra.mxu0 0
        %963 = vmatprep.subr.bf16.mxu0 0
        %964 = vmatpush1.bf16.msra.mxu0 0
        %965 = vmatprep.subr.bf16.mxu0 0
        %966 = vmatpush1.bf16.msra.mxu0 0
        %967 = vmatprep.mubr.bf16.mxu0 0
        %968 = vmatmul.mubr.bf16.gmra.mrb[0].mxu0 %v829
        %v969 = vpop.f32.mrb[0].mxu0
        %v970 = vadd.f32 %v767, %v969
        %v971 = vpop.f32.mrb[0].mxu0
        %v972 = vpop.f32.mrb[0].mxu0
        %v973 = vpop.f32.mrb[0].mxu0
        %974 = vdwg.mxu0
        %v979 = vunpack.c.l.b16 %v696
        %v980 = vunpack.c.l.b16 %v697
        %v981 = vunpack.c.l.b16 %v698
        %v982 = vunpack.c.l.b16 %v699
        %v983 = vpack.c.b16 %v980, %v979
        %v984 = vpack.c.b16 %v982, %v981
        %987 = vmatprep.subr.bf16.mxu0 0
        %988 = vmatpush1.bf16.msra.mxu0 %v983
        %989 = vmatprep.subr.bf16.mxu0 0
        %990 = vmatpush1.bf16.msra.mxu0 %v984
        %991 = vmatprep.subr.bf16.mxu0 0
        %992 = vmatpush1.bf16.msra.mxu0 0
        %993 = vmatprep.subr.bf16.mxu0 0
        %994 = vmatpush1.bf16.msra.mxu0 0
        %995 = vmatprep.subr.bf16.mxu0 0
        %996 = vmatpush1.bf16.msra.mxu0 0
        %997 = vmatprep.subr.bf16.mxu0 0
        %998 = vmatpush1.bf16.msra.mxu0 0
        %999 = vmatprep.subr.bf16.mxu0 0
        %1000 = vmatpush1.bf16.msra.mxu0 0
        %1001 = vmatprep.subr.bf16.mxu0 0
        %1002 = vmatpush1.bf16.msra.mxu0 0
        %1003 = vmatprep.subr.bf16.mxu0 0
        %1004 = vmatpush1.bf16.msra.mxu0 0
        %1005 = vmatprep.subr.bf16.mxu0 0
        %1006 = vmatpush1.bf16.msra.mxu0 0
        %1007 = vmatprep.subr.bf16.mxu0 0
        %1008 = vmatpush1.bf16.msra.mxu0 0
        %1009 = vmatprep.subr.bf16.mxu0 0
        %1010 = vmatpush1.bf16.msra.mxu0 0
        %1011 = vmatprep.subr.bf16.mxu0 0
        %1012 = vmatpush1.bf16.msra.mxu0 0
        %1013 = vmatprep.subr.bf16.mxu0 0
        %1014 = vmatpush1.bf16.msra.mxu0 0
        %1015 = vmatprep.subr.bf16.mxu0 0
        %1016 = vmatpush1.bf16.msra.mxu0 0
        %1017 = vmatprep.subr.bf16.mxu0 0
        %1018 = vmatpush1.bf16.msra.mxu0 0
        %1019 = vmatprep.mubr.bf16.mxu0 0
        %1020 = vmatmul.mubr.bf16.gmra.mrb[0].mxu0 %v829
        %v1021 = vpop.f32.mrb[0].mxu0
        %v1022 = vadd.f32 %v771, %v1021
        %v1023 = vpop.f32.mrb[0].mxu0
        %v1024 = vpop.f32.mrb[0].mxu0
        %v1025 = vpop.f32.mrb[0].mxu0
        %1026 = vdwg.mxu0
        %v1031 = vunpack.c.l.b16 %v700
        %v1032 = vunpack.c.l.b16 %v701
        %v1033 = vunpack.c.l.b16 %v702
        %v1034 = vunpack.c.l.b16 %v703
        %v1035 = vpack.c.b16 %v1032, %v1031
        %v1036 = vpack.c.b16 %v1034, %v1033
        %1039 = vmatprep.subr.bf16.mxu0 0
        %1040 = vmatpush1.bf16.msra.mxu0 %v1035
        %1041 = vmatprep.subr.bf16.mxu0 0
        %1042 = vmatpush1.bf16.msra.mxu0 %v1036
        %1043 = vmatprep.subr.bf16.mxu0 0
        %1044 = vmatpush1.bf16.msra.mxu0 0
        %1045 = vmatprep.subr.bf16.mxu0 0
        %1046 = vmatpush1.bf16.msra.mxu0 0
        %1047 = vmatprep.subr.bf16.mxu0 0
        %1048 = vmatpush1.bf16.msra.mxu0 0
        %1049 = vmatprep.subr.bf16.mxu0 0
        %1050 = vmatpush1.bf16.msra.mxu0 0
        %1051 = vmatprep.subr.bf16.mxu0 0
        %1052 = vmatpush1.bf16.msra.mxu0 0
        %1053 = vmatprep.subr.bf16.mxu0 0
        %1054 = vmatpush1.bf16.msra.mxu0 0
        %1055 = vmatprep.subr.bf16.mxu0 0
        %1056 = vmatpush1.bf16.msra.mxu0 0
        %1057 = vmatprep.subr.bf16.mxu0 0
        %1058 = vmatpush1.bf16.msra.mxu0 0
        %1059 = vmatprep.subr.bf16.mxu0 0
        %1060 = vmatpush1.bf16.msra.mxu0 0
        %1061 = vmatprep.subr.bf16.mxu0 0
        %1062 = vmatpush1.bf16.msra.mxu0 0
        %1063 = vmatprep.subr.bf16.mxu0 0
        %1064 = vmatpush1.bf16.msra.mxu0 0
        %1065 = vmatprep.subr.bf16.mxu0 0
        %1066 = vmatpush1.bf16.msra.mxu0 0
        %1067 = vmatprep.subr.bf16.mxu0 0
        %1068 = vmatpush1.bf16.msra.mxu0 0
        %1069 = vmatprep.subr.bf16.mxu0 0
        %1070 = vmatpush1.bf16.msra.mxu0 0
        %1071 = vmatprep.mubr.bf16.mxu0 0
        %1072 = vmatmul.mubr.bf16.gmra.mrb[0].mxu0 %v829
        %v1073 = vpop.f32.mrb[0].mxu0
        %v1074 = vadd.f32 %v775, %v1073
        %v1075 = vpop.f32.mrb[0].mxu0
        %v1076 = vpop.f32.mrb[0].mxu0
        %v1077 = vpop.f32.mrb[0].mxu0
        %1078 = vdwg.mxu0
        %v1083 = vunpack.c.l.b16 %v704
        %v1084 = vunpack.c.l.b16 %v705
        %v1085 = vunpack.c.l.b16 %v706
        %v1086 = vunpack.c.l.b16 %v707
        %v1087 = vpack.c.b16 %v1084, %v1083
        %v1088 = vpack.c.b16 %v1086, %v1085
        %1091 = vmatprep.subr.bf16.mxu0 0
        %1092 = vmatpush1.bf16.msra.mxu0 %v1087
        %1093 = vmatprep.subr.bf16.mxu0 0
        %1094 = vmatpush1.bf16.msra.mxu0 %v1088
        %1095 = vmatprep.subr.bf16.mxu0 0
        %1096 = vmatpush1.bf16.msra.mxu0 0
        %1097 = vmatprep.subr.bf16.mxu0 0
        %1098 = vmatpush1.bf16.msra.mxu0 0
        %1099 = vmatprep.subr.bf16.mxu0 0
        %1100 = vmatpush1.bf16.msra.mxu0 0
        %1101 = vmatprep.subr.bf16.mxu0 0
        %1102 = vmatpush1.bf16.msra.mxu0 0
        %1103 = vmatprep.subr.bf16.mxu0 0
        %1104 = vmatpush1.bf16.msra.mxu0 0
        %1105 = vmatprep.subr.bf16.mxu0 0
        %1106 = vmatpush1.bf16.msra.mxu0 0
        %1107 = vmatprep.subr.bf16.mxu0 0
        %1108 = vmatpush1.bf16.msra.mxu0 0
        %1109 = vmatprep.subr.bf16.mxu0 0
        %1110 = vmatpush1.bf16.msra.mxu0 0
        %1111 = vmatprep.subr.bf16.mxu0 0
        %1112 = vmatpush1.bf16.msra.mxu0 0
        %1113 = vmatprep.subr.bf16.mxu0 0
        %1114 = vmatpush1.bf16.msra.mxu0 0
        %1115 = vmatprep.subr.bf16.mxu0 0
        %1116 = vmatpush1.bf16.msra.mxu0 0
        %1117 = vmatprep.subr.bf16.mxu0 0
        %1118 = vmatpush1.bf16.msra.mxu0 0
        %1119 = vmatprep.subr.bf16.mxu0 0
        %1120 = vmatpush1.bf16.msra.mxu0 0
        %1121 = vmatprep.subr.bf16.mxu0 0
        %1122 = vmatpush1.bf16.msra.mxu0 0
        %1123 = vmatprep.mubr.bf16.mxu0 0
        %1124 = vmatmul.mubr.bf16.gmra.mrb[0].mxu0 %v829
        %v1125 = vpop.f32.mrb[0].mxu0
        %v1126 = vadd.f32 %v779, %v1125
        %v1127 = vpop.f32.mrb[0].mxu0
        %v1128 = vpop.f32.mrb[0].mxu0
        %v1129 = vpop.f32.mrb[0].mxu0
        %1130 = vdwg.mxu0
        %v1135 = vunpack.c.l.b16 %v708
        %v1136 = vunpack.c.l.b16 %v709
        %v1137 = vunpack.c.l.b16 %v710
        %v1138 = vunpack.c.l.b16 %v711
        %v1139 = vpack.c.b16 %v1136, %v1135
        %v1140 = vpack.c.b16 %v1138, %v1137
        %1143 = vmatprep.subr.bf16.mxu0 0
        %1144 = vmatpush1.bf16.msra.mxu0 %v1139
        %1145 = vmatprep.subr.bf16.mxu0 0
        %1146 = vmatpush1.bf16.msra.mxu0 %v1140
        %1147 = vmatprep.subr.bf16.mxu0 0
        %1148 = vmatpush1.bf16.msra.mxu0 0
        %1149 = vmatprep.subr.bf16.mxu0 0
        %1150 = vmatpush1.bf16.msra.mxu0 0
        %1151 = vmatprep.subr.bf16.mxu0 0
        %1152 = vmatpush1.bf16.msra.mxu0 0
        %1153 = vmatprep.subr.bf16.mxu0 0
        %1154 = vmatpush1.bf16.msra.mxu0 0
        %1155 = vmatprep.subr.bf16.mxu0 0
        %1156 = vmatpush1.bf16.msra.mxu0 0
        %1157 = vmatprep.subr.bf16.mxu0 0
        %1158 = vmatpush1.bf16.msra.mxu0 0
        %1159 = vmatprep.subr.bf16.mxu0 0
        %1160 = vmatpush1.bf16.msra.mxu0 0
        %1161 = vmatprep.subr.bf16.mxu0 0
        %1162 = vmatpush1.bf16.msra.mxu0 0
        %1163 = vmatprep.subr.bf16.mxu0 0
        %1164 = vmatpush1.bf16.msra.mxu0 0
        %1165 = vmatprep.subr.bf16.mxu0 0
        %1166 = vmatpush1.bf16.msra.mxu0 0
        %1167 = vmatprep.subr.bf16.mxu0 0
        %1168 = vmatpush1.bf16.msra.mxu0 0
        %1169 = vmatprep.subr.bf16.mxu0 0
        %1170 = vmatpush1.bf16.msra.mxu0 0
        %1171 = vmatprep.subr.bf16.mxu0 0
        %1172 = vmatpush1.bf16.msra.mxu0 0
        %1173 = vmatprep.subr.bf16.mxu0 0
        %1174 = vmatpush1.bf16.msra.mxu0 0
        %1175 = vmatprep.mubr.bf16.mxu0 0
        %1176 = vmatmul.mubr.bf16.gmra.mrb[0].mxu0 %v829
        %v1177 = vpop.f32.mrb[0].mxu0
        %v1178 = vadd.f32 %v783, %v1177
        %v1179 = vpop.f32.mrb[0].mxu0
        %v1180 = vpop.f32.mrb[0].mxu0
        %v1181 = vpop.f32.mrb[0].mxu0
        %1182 = vdwg.mxu0
        %v1187 = vunpack.c.l.b16 %v712
        %v1188 = vunpack.c.l.b16 %v713
        %v1189 = vunpack.c.l.b16 %v714
        %v1190 = vunpack.c.l.b16 %v715
        %v1191 = vpack.c.b16 %v1188, %v1187
        %v1192 = vpack.c.b16 %v1190, %v1189
        %1195 = vmatprep.subr.bf16.mxu0 0
        %1196 = vmatpush1.bf16.msra.mxu0 %v1191
        %1197 = vmatprep.subr.bf16.mxu0 0
        %1198 = vmatpush1.bf16.msra.mxu0 %v1192
        %1199 = vmatprep.subr.bf16.mxu0 0
        %1200 = vmatpush1.bf16.msra.mxu0 0
        %1201 = vmatprep.subr.bf16.mxu0 0
        %1202 = vmatpush1.bf16.msra.mxu0 0
        %1203 = vmatprep.subr.bf16.mxu0 0
        %1204 = vmatpush1.bf16.msra.mxu0 0
        %1205 = vmatprep.subr.bf16.mxu0 0
        %1206 = vmatpush1.bf16.msra.mxu0 0
        %1207 = vmatprep.subr.bf16.mxu0 0
        %1208 = vmatpush1.bf16.msra.mxu0 0
        %1209 = vmatprep.subr.bf16.mxu0 0
        %1210 = vmatpush1.bf16.msra.mxu0 0
        %1211 = vmatprep.subr.bf16.mxu0 0
        %1212 = vmatpush1.bf16.msra.mxu0 0
        %1213 = vmatprep.subr.bf16.mxu0 0
        %1214 = vmatpush1.bf16.msra.mxu0 0
        %1215 = vmatprep.subr.bf16.mxu0 0
        %1216 = vmatpush1.bf16.msra.mxu0 0
        %1217 = vmatprep.subr.bf16.mxu0 0
        %1218 = vmatpush1.bf16.msra.mxu0 0
        %1219 = vmatprep.subr.bf16.mxu0 0
        %1220 = vmatpush1.bf16.msra.mxu0 0
        %1221 = vmatprep.subr.bf16.mxu0 0
        %1222 = vmatpush1.bf16.msra.mxu0 0
        %1223 = vmatprep.subr.bf16.mxu0 0
        %1224 = vmatpush1.bf16.msra.mxu0 0
        %1225 = vmatprep.subr.bf16.mxu0 0
        %1226 = vmatpush1.bf16.msra.mxu0 0
        %1227 = vmatprep.mubr.bf16.mxu0 0
        %1228 = vmatmul.mubr.bf16.gmra.mrb[0].mxu0 %v829
        %v1229 = vpop.f32.mrb[0].mxu0
        %v1230 = vadd.f32 %v787, %v1229
        %v1231 = vpop.f32.mrb[0].mxu0
        %v1232 = vpop.f32.mrb[0].mxu0
        %v1233 = vpop.f32.mrb[0].mxu0
        %1234 = vdwg.mxu0
        %v1239 = vunpack.c.l.b16 %v716
        %v1240 = vunpack.c.l.b16 %v717
        %v1241 = vunpack.c.l.b16 %v718
        %v1242 = vunpack.c.l.b16 %v719
        %v1243 = vpack.c.b16 %v1240, %v1239
        %v1244 = vpack.c.b16 %v1242, %v1241
        %1247 = vmatprep.subr.bf16.mxu0 0
        %1248 = vmatpush1.bf16.msra.mxu0 %v1243
        %1249 = vmatprep.subr.bf16.mxu0 0
        %1250 = vmatpush1.bf16.msra.mxu0 %v1244
        %1251 = vmatprep.subr.bf16.mxu0 0
        %1252 = vmatpush1.bf16.msra.mxu0 0
        %1253 = vmatprep.subr.bf16.mxu0 0
        %1254 = vmatpush1.bf16.msra.mxu0 0
        %1255 = vmatprep.subr.bf16.mxu0 0
        %1256 = vmatpush1.bf16.msra.mxu0 0
        %1257 = vmatprep.subr.bf16.mxu0 0
        %1258 = vmatpush1.bf16.msra.mxu0 0
        %1259 = vmatprep.subr.bf16.mxu0 0
        %1260 = vmatpush1.bf16.msra.mxu0 0
        %1261 = vmatprep.subr.bf16.mxu0 0
        %1262 = vmatpush1.bf16.msra.mxu0 0
        %1263 = vmatprep.subr.bf16.mxu0 0
        %1264 = vmatpush1.bf16.msra.mxu0 0
        %1265 = vmatprep.subr.bf16.mxu0 0
        %1266 = vmatpush1.bf16.msra.mxu0 0
        %1267 = vmatprep.subr.bf16.mxu0 0
        %1268 = vmatpush1.bf16.msra.mxu0 0
        %1269 = vmatprep.subr.bf16.mxu0 0
        %1270 = vmatpush1.bf16.msra.mxu0 0
        %1271 = vmatprep.subr.bf16.mxu0 0
        %1272 = vmatpush1.bf16.msra.mxu0 0
        %1273 = vmatprep.subr.bf16.mxu0 0
        %1274 = vmatpush1.bf16.msra.mxu0 0
        %1275 = vmatprep.subr.bf16.mxu0 0
        %1276 = vmatpush1.bf16.msra.mxu0 0
        %1277 = vmatprep.subr.bf16.mxu0 0
        %1278 = vmatpush1.bf16.msra.mxu0 0
        %1279 = vmatprep.mubr.bf16.mxu0 0
        %1280 = vmatmul.mubr.bf16.gmra.mrb[0].mxu0 %v829
        %v1281 = vpop.f32.mrb[0].mxu0
        %v1282 = vadd.f32 %v791, %v1281
        %v1283 = vpop.f32.mrb[0].mxu0
        %v1284 = vpop.f32.mrb[0].mxu0
        %v1285 = vpop.f32.mrb[0].mxu0
        %1286 = vdwg.mxu0
        %v1291 = vunpack.c.l.b16 %v720
        %v1292 = vunpack.c.l.b16 %v721
        %v1293 = vunpack.c.l.b16 %v722
        %v1294 = vunpack.c.l.b16 %v723
        %v1295 = vpack.c.b16 %v1292, %v1291
        %v1296 = vpack.c.b16 %v1294, %v1293
        %1299 = vmatprep.subr.bf16.mxu0 0
        %1300 = vmatpush1.bf16.msra.mxu0 %v1295
        %1301 = vmatprep.subr.bf16.mxu0 0
        %1302 = vmatpush1.bf16.msra.mxu0 %v1296
        %1303 = vmatprep.subr.bf16.mxu0 0
        %1304 = vmatpush1.bf16.msra.mxu0 0
        %1305 = vmatprep.subr.bf16.mxu0 0
        %1306 = vmatpush1.bf16.msra.mxu0 0
        %1307 = vmatprep.subr.bf16.mxu0 0
        %1308 = vmatpush1.bf16.msra.mxu0 0
        %1309 = vmatprep.subr.bf16.mxu0 0
        %1310 = vmatpush1.bf16.msra.mxu0 0
        %1311 = vmatprep.subr.bf16.mxu0 0
        %1312 = vmatpush1.bf16.msra.mxu0 0
        %1313 = vmatprep.subr.bf16.mxu0 0
        %1314 = vmatpush1.bf16.msra.mxu0 0
        %1315 = vmatprep.subr.bf16.mxu0 0
        %1316 = vmatpush1.bf16.msra.mxu0 0
        %1317 = vmatprep.subr.bf16.mxu0 0
        %1318 = vmatpush1.bf16.msra.mxu0 0
        %1319 = vmatprep.subr.bf16.mxu0 0
        %1320 = vmatpush1.bf16.msra.mxu0 0
        %1321 = vmatprep.subr.bf16.mxu0 0
        %1322 = vmatpush1.bf16.msra.mxu0 0
        %1323 = vmatprep.subr.bf16.mxu0 0
        %1324 = vmatpush1.bf16.msra.mxu0 0
        %1325 = vmatprep.subr.bf16.mxu0 0
        %1326 = vmatpush1.bf16.msra.mxu0 0
        %1327 = vmatprep.subr.bf16.mxu0 0
        %1328 = vmatpush1.bf16.msra.mxu0 0
        %1329 = vmatprep.subr.bf16.mxu0 0
        %1330 = vmatpush1.bf16.msra.mxu0 0
        %1331 = vmatprep.mubr.bf16.mxu0 0
        %1332 = vmatmul.mubr.bf16.gmra.mrb[0].mxu0 %v829
        %v1333 = vpop.f32.mrb[0].mxu0
        %v1334 = vadd.f32 %v795, %v1333
        %v1335 = vpop.f32.mrb[0].mxu0
        %v1336 = vpop.f32.mrb[0].mxu0
        %v1337 = vpop.f32.mrb[0].mxu0
        %1338 = vdwg.mxu0
        %v1343 = vunpack.c.l.b16 %v724
        %v1344 = vunpack.c.l.b16 %v725
        %v1345 = vunpack.c.l.b16 %v726
        %v1346 = vunpack.c.l.b16 %v727
        %v1347 = vpack.c.b16 %v1344, %v1343
        %v1348 = vpack.c.b16 %v1346, %v1345
        %1351 = vmatprep.subr.bf16.mxu0 0
        %1352 = vmatpush1.bf16.msra.mxu0 %v1347
        %1353 = vmatprep.subr.bf16.mxu0 0
        %1354 = vmatpush1.bf16.msra.mxu0 %v1348
        %1355 = vmatprep.subr.bf16.mxu0 0
        %1356 = vmatpush1.bf16.msra.mxu0 0
        %1357 = vmatprep.subr.bf16.mxu0 0
        %1358 = vmatpush1.bf16.msra.mxu0 0
        %1359 = vmatprep.subr.bf16.mxu0 0
        %1360 = vmatpush1.bf16.msra.mxu0 0
        %1361 = vmatprep.subr.bf16.mxu0 0
        %1362 = vmatpush1.bf16.msra.mxu0 0
        %1363 = vmatprep.subr.bf16.mxu0 0
        %1364 = vmatpush1.bf16.msra.mxu0 0
        %1365 = vmatprep.subr.bf16.mxu0 0
        %1366 = vmatpush1.bf16.msra.mxu0 0
        %1367 = vmatprep.subr.bf16.mxu0 0
        %1368 = vmatpush1.bf16.msra.mxu0 0
        %1369 = vmatprep.subr.bf16.mxu0 0
        %1370 = vmatpush1.bf16.msra.mxu0 0
        %1371 = vmatprep.subr.bf16.mxu0 0
        %1372 = vmatpush1.bf16.msra.mxu0 0
        %1373 = vmatprep.subr.bf16.mxu0 0
        %1374 = vmatpush1.bf16.msra.mxu0 0
        %1375 = vmatprep.subr.bf16.mxu0 0
        %1376 = vmatpush1.bf16.msra.mxu0 0
        %1377 = vmatprep.subr.bf16.mxu0 0
        %1378 = vmatpush1.bf16.msra.mxu0 0
        %1379 = vmatprep.subr.bf16.mxu0 0
        %1380 = vmatpush1.bf16.msra.mxu0 0
        %1381 = vmatprep.subr.bf16.mxu0 0
        %1382 = vmatpush1.bf16.msra.mxu0 0
        %1383 = vmatprep.mubr.bf16.mxu0 0
        %1384 = vmatmul.mubr.bf16.gmra.mrb[0].mxu0 %v829
        %v1385 = vpop.f32.mrb[0].mxu0
        %v1386 = vadd.f32 %v799, %v1385
        %v1387 = vpop.f32.mrb[0].mxu0
        %v1388 = vpop.f32.mrb[0].mxu0
        %v1389 = vpop.f32.mrb[0].mxu0
        %1390 = vdwg.mxu0
        %v1395 = vunpack.c.l.b16 %v728
        %v1396 = vunpack.c.l.b16 %v729
        %v1397 = vunpack.c.l.b16 %v730
        %v1398 = vunpack.c.l.b16 %v731
        %v1399 = vpack.c.b16 %v1396, %v1395
        %v1400 = vpack.c.b16 %v1398, %v1397
        %1403 = vmatprep.subr.bf16.mxu0 0
        %1404 = vmatpush1.bf16.msra.mxu0 %v1399
        %1405 = vmatprep.subr.bf16.mxu0 0
        %1406 = vmatpush1.bf16.msra.mxu0 %v1400
        %1407 = vmatprep.subr.bf16.mxu0 0
        %1408 = vmatpush1.bf16.msra.mxu0 0
        %1409 = vmatprep.subr.bf16.mxu0 0
        %1410 = vmatpush1.bf16.msra.mxu0 0
        %1411 = vmatprep.subr.bf16.mxu0 0
        %1412 = vmatpush1.bf16.msra.mxu0 0
        %1413 = vmatprep.subr.bf16.mxu0 0
        %1414 = vmatpush1.bf16.msra.mxu0 0
        %1415 = vmatprep.subr.bf16.mxu0 0
        %1416 = vmatpush1.bf16.msra.mxu0 0
        %1417 = vmatprep.subr.bf16.mxu0 0
        %1418 = vmatpush1.bf16.msra.mxu0 0
        %1419 = vmatprep.subr.bf16.mxu0 0
        %1420 = vmatpush1.bf16.msra.mxu0 0
        %1421 = vmatprep.subr.bf16.mxu0 0
        %1422 = vmatpush1.bf16.msra.mxu0 0
        %1423 = vmatprep.subr.bf16.mxu0 0
        %1424 = vmatpush1.bf16.msra.mxu0 0
        %1425 = vmatprep.subr.bf16.mxu0 0
        %1426 = vmatpush1.bf16.msra.mxu0 0
        %1427 = vmatprep.subr.bf16.mxu0 0
        %1428 = vmatpush1.bf16.msra.mxu0 0
        %1429 = vmatprep.subr.bf16.mxu0 0
        %1430 = vmatpush1.bf16.msra.mxu0 0
        %1431 = vmatprep.subr.bf16.mxu0 0
        %1432 = vmatpush1.bf16.msra.mxu0 0
        %1433 = vmatprep.subr.bf16.mxu0 0
        %1434 = vmatpush1.bf16.msra.mxu0 0
        %1435 = vmatprep.mubr.bf16.mxu0 0
        %1436 = vmatmul.mubr.bf16.gmra.mrb[0].mxu0 %v829
        %v1437 = vpop.f32.mrb[0].mxu0
        %v1438 = vadd.f32 %v803, %v1437
        %v1439 = vpop.f32.mrb[0].mxu0
        %v1440 = vpop.f32.mrb[0].mxu0
        %v1441 = vpop.f32.mrb[0].mxu0
        %1442 = vdwg.mxu0
        %v1443 = vlaneseq
        %v1444 = vshrl.u32 %v1443, 7
        %v1445 = vlaneseq
        %v1446 = vand.u32 %v1445, 127
        %vm1447 = vcmp.le.s32.totalorder %v1446, %v1444
        %v1448 = vpack.c.bf16 %v866, %v866
        %v1449 = vpack.c.bf16 %v918, %v918
        %v1450 = vpack.c.bf16 %v970, %v970
        %v1451 = vpack.c.bf16 %v1022, %v1022
        %v1452 = vpack.c.bf16 %v1074, %v1074
        %v1453 = vpack.c.bf16 %v1126, %v1126
        %v1454 = vpack.c.bf16 %v1178, %v1178
        %v1455 = vpack.c.bf16 %v1230, %v1230
        %vm1456 = vcmask 64512
        %v1458 = vsel %vm1456, %v1448, 0
        %v1461 = vsel %vm1456, %v1452, 0
        %1463 = vmatprep.subr.bf16.mxu0 0
        %1464 = vmatpush1.bf16.xpose.msra.mxu0 %v1461
        %1465 = vmatprep.subr.bf16.mxu0 0
        %1466 = vmatpush1.bf16.xpose.msra.mxu0 0
        %1467 = vmatprep.subr.bf16.mxu0 0
        %1468 = vmatpush1.bf16.xpose.msra.mxu0 0
        %1469 = vmatprep.subr.bf16.mxu0 0
        %1470 = vmatpush1.bf16.xpose.msra.mxu0 0
        %1471 = vmatprep.subr.bf16.mxu0 0
        %1472 = vmatpush1.bf16.xpose.msra.mxu0 0
        %1473 = vmatprep.subr.bf16.mxu0 0
        %1474 = vmatpush1.bf16.xpose.msra.mxu0 0
        %1475 = vmatprep.subr.bf16.mxu0 0
        %1476 = vmatpush1.bf16.xpose.msra.mxu0 0
        %1477 = vmatprep.subr.bf16.mxu0 0
        %1478 = vmatpush1.bf16.xpose.msra.mxu0 0
        %1479 = vmatprep.subr.bf16.mxu0 0
        %1480 = vmatpush1.bf16.xpose.msra.mxu0 0
        %1481 = vmatprep.subr.bf16.mxu0 0
        %1482 = vmatpush1.bf16.xpose.msra.mxu0 0
        %1483 = vmatprep.subr.bf16.mxu0 0
        %1484 = vmatpush1.bf16.xpose.msra.mxu0 0
        %1485 = vmatprep.subr.bf16.mxu0 0
        %1486 = vmatpush1.bf16.xpose.msra.mxu0 0
        %1487 = vmatprep.subr.bf16.mxu0 0
        %1488 = vmatpush1.bf16.xpose.msra.mxu0 0
        %1489 = vmatprep.subr.bf16.mxu0 0
        %1490 = vmatpush1.bf16.xpose.msra.mxu0 0
        %1491 = vmatprep.subr.bf16.mxu0 0
        %1492 = vmatpush1.bf16.xpose.msra.mxu0 0
        %1493 = vmatprep.subr.bf16.mxu0 0
        %1494 = vmatpush1.bf16.xpose.msra.mxu0 0
        %1495 = vmatprep.mubr.bf16.mxu0 0
        %1496 = vmatmul.mubr.bf16.gmra.mrb[0].mxu0 %v1458
        %v1497 = vpop.f32.mrb[0].mxu0
        %v1498 = vadd.f32 0.0, %v1497
        %v1499 = vpop.f32.mrb[0].mxu0
        %v1500 = vpop.f32.mrb[0].mxu0
        %v1501 = vpop.f32.mrb[0].mxu0
        %1502 = vdwg.mxu0
        %v1504 = vsel %vm1456, %v1449, 0
        %v1507 = vsel %vm1456, %v1453, 0
        %1509 = vmatprep.subr.bf16.mxu0 0
        %1510 = vmatpush1.bf16.xpose.msra.mxu0 %v1507
        %1511 = vmatprep.subr.bf16.mxu0 0
        %1512 = vmatpush1.bf16.xpose.msra.mxu0 0
        %1513 = vmatprep.subr.bf16.mxu0 0
        %1514 = vmatpush1.bf16.xpose.msra.mxu0 0
        %1515 = vmatprep.subr.bf16.mxu0 0
        %1516 = vmatpush1.bf16.xpose.msra.mxu0 0
        %1517 = vmatprep.subr.bf16.mxu0 0
        %1518 = vmatpush1.bf16.xpose.msra.mxu0 0
        %1519 = vmatprep.subr.bf16.mxu0 0
        %1520 = vmatpush1.bf16.xpose.msra.mxu0 0
        %1521 = vmatprep.subr.bf16.mxu0 0
        %1522 = vmatpush1.bf16.xpose.msra.mxu0 0
        %1523 = vmatprep.subr.bf16.mxu0 0
        %1524 = vmatpush1.bf16.xpose.msra.mxu0 0
        %1525 = vmatprep.subr.bf16.mxu0 0
        %1526 = vmatpush1.bf16.xpose.msra.mxu0 0
        %1527 = vmatprep.subr.bf16.mxu0 0
        %1528 = vmatpush1.bf16.xpose.msra.mxu0 0
        %1529 = vmatprep.subr.bf16.mxu0 0
        %1530 = vmatpush1.bf16.xpose.msra.mxu0 0
        %1531 = vmatprep.subr.bf16.mxu0 0
        %1532 = vmatpush1.bf16.xpose.msra.mxu0 0
        %1533 = vmatprep.subr.bf16.mxu0 0
        %1534 = vmatpush1.bf16.xpose.msra.mxu0 0
        %1535 = vmatprep.subr.bf16.mxu0 0
        %1536 = vmatpush1.bf16.xpose.msra.mxu0 0
        %1537 = vmatprep.subr.bf16.mxu0 0
        %1538 = vmatpush1.bf16.xpose.msra.mxu0 0
        %1539 = vmatprep.subr.bf16.mxu0 0
        %1540 = vmatpush1.bf16.xpose.msra.mxu0 0
        %1541 = vmatprep.mubr.bf16.mxu0 0
        %1542 = vmatmul.mubr.bf16.gmra.mrb[0].mxu0 %v1504
        %v1543 = vpop.f32.mrb[0].mxu0
        %v1544 = vadd.f32 0.0, %v1543
        %v1545 = vpop.f32.mrb[0].mxu0
        %v1546 = vpop.f32.mrb[0].mxu0
        %v1547 = vpop.f32.mrb[0].mxu0
        %1548 = vdwg.mxu0
        %v1550 = vsel %vm1456, %v1450, 0
        %v1553 = vsel %vm1456, %v1454, 0
        %1555 = vmatprep.subr.bf16.mxu0 0
        %1556 = vmatpush1.bf16.xpose.msra.mxu0 %v1553
        %1557 = vmatprep.subr.bf16.mxu0 0
        %1558 = vmatpush1.bf16.xpose.msra.mxu0 0
        %1559 = vmatprep.subr.bf16.mxu0 0
        %1560 = vmatpush1.bf16.xpose.msra.mxu0 0
        %1561 = vmatprep.subr.bf16.mxu0 0
        %1562 = vmatpush1.bf16.xpose.msra.mxu0 0
        %1563 = vmatprep.subr.bf16.mxu0 0
        %1564 = vmatpush1.bf16.xpose.msra.mxu0 0
        %1565 = vmatprep.subr.bf16.mxu0 0
        %1566 = vmatpush1.bf16.xpose.msra.mxu0 0
        %1567 = vmatprep.subr.bf16.mxu0 0
        %1568 = vmatpush1.bf16.xpose.msra.mxu0 0
        %1569 = vmatprep.subr.bf16.mxu0 0
        %1570 = vmatpush1.bf16.xpose.msra.mxu0 0
        %1571 = vmatprep.subr.bf16.mxu0 0
        %1572 = vmatpush1.bf16.xpose.msra.mxu0 0
        %1573 = vmatprep.subr.bf16.mxu0 0
        %1574 = vmatpush1.bf16.xpose.msra.mxu0 0
        %1575 = vmatprep.subr.bf16.mxu0 0
        %1576 = vmatpush1.bf16.xpose.msra.mxu0 0
        %1577 = vmatprep.subr.bf16.mxu0 0
        %1578 = vmatpush1.bf16.xpose.msra.mxu0 0
        %1579 = vmatprep.subr.bf16.mxu0 0
        %1580 = vmatpush1.bf16.xpose.msra.mxu0 0
        %1581 = vmatprep.subr.bf16.mxu0 0
        %1582 = vmatpush1.bf16.xpose.msra.mxu0 0
        %1583 = vmatprep.subr.bf16.mxu0 0
        %1584 = vmatpush1.bf16.xpose.msra.mxu0 0
        %1585 = vmatprep.subr.bf16.mxu0 0
        %1586 = vmatpush1.bf16.xpose.msra.mxu0 0
        %1587 = vmatprep.mubr.bf16.mxu0 0
        %1588 = vmatmul.mubr.bf16.gmra.mrb[0].mxu0 %v1550
        %v1589 = vpop.f32.mrb[0].mxu0
        %v1590 = vadd.f32 0.0, %v1589
        %v1591 = vpop.f32.mrb[0].mxu0
        %v1592 = vpop.f32.mrb[0].mxu0
        %v1593 = vpop.f32.mrb[0].mxu0
        %1594 = vdwg.mxu0
        %v1596 = vsel %vm1456, %v1451, 0
        %v1599 = vsel %vm1456, %v1455, 0
        %1601 = vmatprep.subr.bf16.mxu0 0
        %1602 = vmatpush1.bf16.xpose.msra.mxu0 %v1599
        %1603 = vmatprep.subr.bf16.mxu0 0
        %1604 = vmatpush1.bf16.xpose.msra.mxu0 0
        %1605 = vmatprep.subr.bf16.mxu0 0
        %1606 = vmatpush1.bf16.xpose.msra.mxu0 0
        %1607 = vmatprep.subr.bf16.mxu0 0
        %1608 = vmatpush1.bf16.xpose.msra.mxu0 0
        %1609 = vmatprep.subr.bf16.mxu0 0
        %1610 = vmatpush1.bf16.xpose.msra.mxu0 0
        %1611 = vmatprep.subr.bf16.mxu0 0
        %1612 = vmatpush1.bf16.xpose.msra.mxu0 0
        %1613 = vmatprep.subr.bf16.mxu0 0
        %1614 = vmatpush1.bf16.xpose.msra.mxu0 0
        %1615 = vmatprep.subr.bf16.mxu0 0
        %1616 = vmatpush1.bf16.xpose.msra.mxu0 0
        %1617 = vmatprep.subr.bf16.mxu0 0
        %1618 = vmatpush1.bf16.xpose.msra.mxu0 0
        %1619 = vmatprep.subr.bf16.mxu0 0
        %1620 = vmatpush1.bf16.xpose.msra.mxu0 0
        %1621 = vmatprep.subr.bf16.mxu0 0
        %1622 = vmatpush1.bf16.xpose.msra.mxu0 0
        %1623 = vmatprep.subr.bf16.mxu0 0
        %1624 = vmatpush1.bf16.xpose.msra.mxu0 0
        %1625 = vmatprep.subr.bf16.mxu0 0
        %1626 = vmatpush1.bf16.xpose.msra.mxu0 0
        %1627 = vmatprep.subr.bf16.mxu0 0
        %1628 = vmatpush1.bf16.xpose.msra.mxu0 0
        %1629 = vmatprep.subr.bf16.mxu0 0
        %1630 = vmatpush1.bf16.xpose.msra.mxu0 0
        %1631 = vmatprep.subr.bf16.mxu0 0
        %1632 = vmatpush1.bf16.xpose.msra.mxu0 0
        %1633 = vmatprep.mubr.bf16.mxu0 0
        %1634 = vmatmul.mubr.bf16.gmra.mrb[0].mxu0 %v1596
        %v1635 = vpop.f32.mrb[0].mxu0
        %v1636 = vadd.f32 0.0, %v1635
        %v1637 = vpop.f32.mrb[0].mxu0
        %v1638 = vpop.f32.mrb[0].mxu0
        %v1639 = vpop.f32.mrb[0].mxu0
        %1640 = vdwg.mxu0
        %v1641 = vsel %vm1447, 1, 0
        %vm1642 = vcmp.eq.s32.totalorder %v1641, 1
        %v1643 = vsel %vm1642, %v1498, -1e+30
        %v1644 = vsel %vm1642, %v1544, -1e+30
        %v1645 = vsel %vm1642, %v1590, -1e+30
        %v1646 = vsel %vm1642, %v1636, -1e+30
        %v1647 = vsel %vm1456, %v1643, -inf
        %1648 = vmax.xlane.f32.xlu0 %v1647
        %v1649 = vpop.xlane.xlu0 %1648
        %v1650 = vsel %vm1456, %v1644, -inf
        %1651 = vmax.xlane.f32.xlu0 %v1650
        %v1652 = vpop.xlane.xlu0 %1651
        %v1653 = vsel %vm1456, %v1645, -inf
        %1654 = vmax.xlane.f32.xlu0 %v1653
        %v1655 = vpop.xlane.xlu0 %1654
        %v1656 = vsel %vm1456, %v1646, -inf
        %1657 = vmax.xlane.f32.xlu0 %v1656
        %v1658 = vpop.xlane.xlu0 %1657
        %v1659 = vsub.f32 %v1643, %v1649
        %v1660 = vsub.f32 %v1644, %v1652
        %v1661 = vsub.f32 %v1645, %v1655
        %v1662 = vsub.f32 %v1646, %v1658
        %v1663 = vmul.f32 %v1659, 1.442695
        %v1664 = vpow.pop %v1663
        %v1665 = vmul.f32 %v1660, 1.442695
        %v1666 = vpow.pop %v1665
        %v1667 = vmul.f32 %v1661, 1.442695
        %v1668 = vpow.pop %v1667
        %v1669 = vmul.f32 %v1662, 1.442695
        %v1670 = vpow.pop %v1669
        %v1671 = vsel %vm1456, %v1664, 0.0
        %1672 = vadd.xlane.f32.xlu0 %v1671
        %v1673 = vpop.xlane.xlu0 %1672
        %v1674 = vsel %vm1456, %v1666, 0.0
        %1675 = vadd.xlane.f32.xlu0 %v1674
        %v1676 = vpop.xlane.xlu0 %1675
        %v1677 = vsel %vm1456, %v1668, 0.0
        %1678 = vadd.xlane.f32.xlu0 %v1677
        %v1679 = vpop.xlane.xlu0 %1678
        %v1680 = vsel %vm1456, %v1670, 0.0
        %1681 = vadd.xlane.f32.xlu0 %v1680
        %v1682 = vpop.xlane.xlu0 %1681
        %v1683 = vrcp.pop %v1673
        %v1684 = vrcp.pop %v1676
        %v1685 = vrcp.pop %v1679
        %v1686 = vrcp.pop %v1682
        %v1687 = vmul.f32 %v1664, %v1683
        %v1688 = vmul.f32 %v1666, %v1684
        %v1689 = vmul.f32 %v1668, %v1685
        %v1690 = vmul.f32 %v1670, %v1686
        %v1691 = vpack.c.bf16 %v1687, %v1687
        %v1692 = vpack.c.bf16 %v1688, %v1688
        %v1693 = vpack.c.bf16 %v1689, %v1689
        %v1694 = vpack.c.bf16 %v1690, %v1690
        %v1695 = vpack.c.bf16 %v1282, %v1282
        %v1696 = vpack.c.bf16 %v1334, %v1334
        %v1697 = vpack.c.bf16 %v1386, %v1386
        %v1698 = vpack.c.bf16 %v1438, %v1438
        %v1700 = vsel %vm1456, %v1691, 0
        %vm1702 = vcmask 1043456
        %v1704 = vsel %vm1702, %v1695, 0
        %1706 = vmatprep.subr.bf16.mxu0 0
        %1707 = vmatpush1.bf16.msra.mxu0 %v1704
        %1708 = vmatprep.subr.bf16.mxu0 0
        %1709 = vmatpush1.bf16.msra.mxu0 0
        %1710 = vmatprep.subr.bf16.mxu0 0
        %1711 = vmatpush1.bf16.msra.mxu0 0
        %1712 = vmatprep.subr.bf16.mxu0 0
        %1713 = vmatpush1.bf16.msra.mxu0 0
        %1714 = vmatprep.subr.bf16.mxu0 0
        %1715 = vmatpush1.bf16.msra.mxu0 0
        %1716 = vmatprep.subr.bf16.mxu0 0
        %1717 = vmatpush1.bf16.msra.mxu0 0
        %1718 = vmatprep.subr.bf16.mxu0 0
        %1719 = vmatpush1.bf16.msra.mxu0 0
        %1720 = vmatprep.subr.bf16.mxu0 0
        %1721 = vmatpush1.bf16.msra.mxu0 0
        %1722 = vmatprep.subr.bf16.mxu0 0
        %1723 = vmatpush1.bf16.msra.mxu0 0
        %1724 = vmatprep.subr.bf16.mxu0 0
        %1725 = vmatpush1.bf16.msra.mxu0 0
        %1726 = vmatprep.subr.bf16.mxu0 0
        %1727 = vmatpush1.bf16.msra.mxu0 0
        %1728 = vmatprep.subr.bf16.mxu0 0
        %1729 = vmatpush1.bf16.msra.mxu0 0
        %1730 = vmatprep.subr.bf16.mxu0 0
        %1731 = vmatpush1.bf16.msra.mxu0 0
        %1732 = vmatprep.subr.bf16.mxu0 0
        %1733 = vmatpush1.bf16.msra.mxu0 0
        %1734 = vmatprep.subr.bf16.mxu0 0
        %1735 = vmatpush1.bf16.msra.mxu0 0
        %1736 = vmatprep.subr.bf16.mxu0 0
        %1737 = vmatpush1.bf16.msra.mxu0 0
        %1738 = vmatprep.mubr.bf16.mxu0 0
        %1739 = vmatmul.mubr.bf16.gmra.mrb[0].mxu0 %v1700
        %v1740 = vpop.f32.mrb[0].mxu0
        %v1741 = vadd.f32 0.0, %v1740
        %v1742 = vpop.f32.mrb[0].mxu0
        %v1743 = vpop.f32.mrb[0].mxu0
        %v1744 = vpop.f32.mrb[0].mxu0
        %1745 = vdwg.mxu0
        %v1747 = vsel %vm1456, %v1692, 0
        %v1750 = vsel %vm1702, %v1696, 0
        %1752 = vmatprep.subr.bf16.mxu0 0
        %1753 = vmatpush1.bf16.msra.mxu0 %v1750
        %1754 = vmatprep.subr.bf16.mxu0 0
        %1755 = vmatpush1.bf16.msra.mxu0 0
        %1756 = vmatprep.subr.bf16.mxu0 0
        %1757 = vmatpush1.bf16.msra.mxu0 0
        %1758 = vmatprep.subr.bf16.mxu0 0
        %1759 = vmatpush1.bf16.msra.mxu0 0
        %1760 = vmatprep.subr.bf16.mxu0 0
        %1761 = vmatpush1.bf16.msra.mxu0 0
        %1762 = vmatprep.subr.bf16.mxu0 0
        %1763 = vmatpush1.bf16.msra.mxu0 0
        %1764 = vmatprep.subr.bf16.mxu0 0
        %1765 = vmatpush1.bf16.msra.mxu0 0
        %1766 = vmatprep.subr.bf16.mxu0 0
        %1767 = vmatpush1.bf16.msra.mxu0 0
        %1768 = vmatprep.subr.bf16.mxu0 0
        %1769 = vmatpush1.bf16.msra.mxu0 0
        %1770 = vmatprep.subr.bf16.mxu0 0
        %1771 = vmatpush1.bf16.msra.mxu0 0
        %1772 = vmatprep.subr.bf16.mxu0 0
        %1773 = vmatpush1.bf16.msra.mxu0 0
        %1774 = vmatprep.subr.bf16.mxu0 0
        %1775 = vmatpush1.bf16.msra.mxu0 0
        %1776 = vmatprep.subr.bf16.mxu0 0
        %1777 = vmatpush1.bf16.msra.mxu0 0
        %1778 = vmatprep.subr.bf16.mxu0 0
        %1779 = vmatpush1.bf16.msra.mxu0 0
        %1780 = vmatprep.subr.bf16.mxu0 0
        %1781 = vmatpush1.bf16.msra.mxu0 0
        %1782 = vmatprep.subr.bf16.mxu0 0
        %1783 = vmatpush1.bf16.msra.mxu0 0
        %1784 = vmatprep.mubr.bf16.mxu0 0
        %1785 = vmatmul.mubr.bf16.gmra.mrb[0].mxu0 %v1747
        %v1786 = vpop.f32.mrb[0].mxu0
        %v1787 = vadd.f32 0.0, %v1786
        %v1788 = vpop.f32.mrb[0].mxu0
        %v1789 = vpop.f32.mrb[0].mxu0
        %v1790 = vpop.f32.mrb[0].mxu0
        %1791 = vdwg.mxu0
        %v1793 = vsel %vm1456, %v1693, 0
        %v1796 = vsel %vm1702, %v1697, 0
        %1798 = vmatprep.subr.bf16.mxu0 0
        %1799 = vmatpush1.bf16.msra.mxu0 %v1796
        %1800 = vmatprep.subr.bf16.mxu0 0
        %1801 = vmatpush1.bf16.msra.mxu0 0
        %1802 = vmatprep.subr.bf16.mxu0 0
        %1803 = vmatpush1.bf16.msra.mxu0 0
        %1804 = vmatprep.subr.bf16.mxu0 0
        %1805 = vmatpush1.bf16.msra.mxu0 0
        %1806 = vmatprep.subr.bf16.mxu0 0
        %1807 = vmatpush1.bf16.msra.mxu0 0
        %1808 = vmatprep.subr.bf16.mxu0 0
        %1809 = vmatpush1.bf16.msra.mxu0 0
        %1810 = vmatprep.subr.bf16.mxu0 0
        %1811 = vmatpush1.bf16.msra.mxu0 0
        %1812 = vmatprep.subr.bf16.mxu0 0
        %1813 = vmatpush1.bf16.msra.mxu0 0
        %1814 = vmatprep.subr.bf16.mxu0 0
        %1815 = vmatpush1.bf16.msra.mxu0 0
        %1816 = vmatprep.subr.bf16.mxu0 0
        %1817 = vmatpush1.bf16.msra.mxu0 0
        %1818 = vmatprep.subr.bf16.mxu0 0
        %1819 = vmatpush1.bf16.msra.mxu0 0
        %1820 = vmatprep.subr.bf16.mxu0 0
        %1821 = vmatpush1.bf16.msra.mxu0 0
        %1822 = vmatprep.subr.bf16.mxu0 0
        %1823 = vmatpush1.bf16.msra.mxu0 0
        %1824 = vmatprep.subr.bf16.mxu0 0
        %1825 = vmatpush1.bf16.msra.mxu0 0
        %1826 = vmatprep.subr.bf16.mxu0 0
        %1827 = vmatpush1.bf16.msra.mxu0 0
        %1828 = vmatprep.subr.bf16.mxu0 0
        %1829 = vmatpush1.bf16.msra.mxu0 0
        %1830 = vmatprep.mubr.bf16.mxu0 0
        %1831 = vmatmul.mubr.bf16.gmra.mrb[0].mxu0 %v1793
        %v1832 = vpop.f32.mrb[0].mxu0
        %v1833 = vadd.f32 0.0, %v1832
        %v1834 = vpop.f32.mrb[0].mxu0
        %v1835 = vpop.f32.mrb[0].mxu0
        %v1836 = vpop.f32.mrb[0].mxu0
        %1837 = vdwg.mxu0
        %v1839 = vsel %vm1456, %v1694, 0
        %v1842 = vsel %vm1702, %v1698, 0
        %1844 = vmatprep.subr.bf16.mxu0 0
        %1845 = vmatpush1.bf16.msra.mxu0 %v1842
        %1846 = vmatprep.subr.bf16.mxu0 0
        %1847 = vmatpush1.bf16.msra.mxu0 0
        %1848 = vmatprep.subr.bf16.mxu0 0
        %1849 = vmatpush1.bf16.msra.mxu0 0
        %1850 = vmatprep.subr.bf16.mxu0 0
        %1851 = vmatpush1.bf16.msra.mxu0 0
        %1852 = vmatprep.subr.bf16.mxu0 0
        %1853 = vmatpush1.bf16.msra.mxu0 0
        %1854 = vmatprep.subr.bf16.mxu0 0
        %1855 = vmatpush1.bf16.msra.mxu0 0
        %1856 = vmatprep.subr.bf16.mxu0 0
        %1857 = vmatpush1.bf16.msra.mxu0 0
        %1858 = vmatprep.subr.bf16.mxu0 0
        %1859 = vmatpush1.bf16.msra.mxu0 0
        %1860 = vmatprep.subr.bf16.mxu0 0
        %1861 = vmatpush1.bf16.msra.mxu0 0
        %1862 = vmatprep.subr.bf16.mxu0 0
        %1863 = vmatpush1.bf16.msra.mxu0 0
        %1864 = vmatprep.subr.bf16.mxu0 0
        %1865 = vmatpush1.bf16.msra.mxu0 0
        %1866 = vmatprep.subr.bf16.mxu0 0
        %1867 = vmatpush1.bf16.msra.mxu0 0
        %1868 = vmatprep.subr.bf16.mxu0 0
        %1869 = vmatpush1.bf16.msra.mxu0 0
        %1870 = vmatprep.subr.bf16.mxu0 0
        %1871 = vmatpush1.bf16.msra.mxu0 0
        %1872 = vmatprep.subr.bf16.mxu0 0
        %1873 = vmatpush1.bf16.msra.mxu0 0
        %1874 = vmatprep.subr.bf16.mxu0 0
        %1875 = vmatpush1.bf16.msra.mxu0 0
        %1876 = vmatprep.mubr.bf16.mxu0 0
        %1877 = vmatmul.mubr.bf16.gmra.mrb[0].mxu0 %v1839
        %v1878 = vpop.f32.mrb[0].mxu0
        %v1879 = vadd.f32 0.0, %v1878
        %v1880 = vpop.f32.mrb[0].mxu0
        %v1881 = vpop.f32.mrb[0].mxu0
        %v1882 = vpop.f32.mrb[0].mxu0
        %1883 = vdwg.mxu0
        %v1884 = vpack.c.bf16 %v1741, %v1741
        %v1885 = vpack.c.bf16 %v1787, %v1787
        %v1886 = vpack.c.bf16 %v1833, %v1833
        %v1887 = vpack.c.bf16 %v1879, %v1879
        %v1888 = vld [vmem:[%s617] sm:$0xf]
        %v1889 = vld [vmem:[%s617 + $0x4] sm:$0xf]
        %v1890 = vld [vmem:[%s617 + $0x8] sm:$0xf]
        %v1891 = vld [vmem:[%s617 + $0xc] sm:$0xf]
        %v1893 = vsel %vm1456, %v1884, 0
        %v1896 = vsel %vm1702, %v1888, 0
        %1898 = vmatprep.subr.bf16.mxu0 0
        %1899 = vmatpush1.bf16.msra.mxu0 %v1896
        %1900 = vmatprep.subr.bf16.mxu0 0
        %1901 = vmatpush1.bf16.msra.mxu0 0
        %1902 = vmatprep.subr.bf16.mxu0 0
        %1903 = vmatpush1.bf16.msra.mxu0 0
        %1904 = vmatprep.subr.bf16.mxu0 0
        %1905 = vmatpush1.bf16.msra.mxu0 0
        %1906 = vmatprep.subr.bf16.mxu0 0
        %1907 = vmatpush1.bf16.msra.mxu0 0
        %1908 = vmatprep.subr.bf16.mxu0 0
        %1909 = vmatpush1.bf16.msra.mxu0 0
        %1910 = vmatprep.subr.bf16.mxu0 0
        %1911 = vmatpush1.bf16.msra.mxu0 0
        %1912 = vmatprep.subr.bf16.mxu0 0
        %1913 = vmatpush1.bf16.msra.mxu0 0
        %1914 = vmatprep.subr.bf16.mxu0 0
        %1915 = vmatpush1.bf16.msra.mxu0 0
        %1916 = vmatprep.subr.bf16.mxu0 0
        %1917 = vmatpush1.bf16.msra.mxu0 0
        %1918 = vmatprep.subr.bf16.mxu0 0
        %1919 = vmatpush1.bf16.msra.mxu0 0
        %1920 = vmatprep.subr.bf16.mxu0 0
        %1921 = vmatpush1.bf16.msra.mxu0 0
        %1922 = vmatprep.subr.bf16.mxu0 0
        %1923 = vmatpush1.bf16.msra.mxu0 0
        %1924 = vmatprep.subr.bf16.mxu0 0
        %1925 = vmatpush1.bf16.msra.mxu0 0
        %1926 = vmatprep.subr.bf16.mxu0 0
        %1927 = vmatpush1.bf16.msra.mxu0 0
        %1928 = vmatprep.subr.bf16.mxu0 0
        %1929 = vmatpush1.bf16.msra.mxu0 0
        %1930 = vmatprep.mubr.bf16.mxu0 0
        %1931 = vmatmul.mubr.bf16.gmra.mrb[0].mxu0 %v1893
        %v1932 = vpop.f32.mrb[0].mxu0
        %v1933 = vadd.f32 0.0, %v1932
        %v1934 = vpop.f32.mrb[0].mxu0
        %v1935 = vpop.f32.mrb[0].mxu0
        %v1936 = vpop.f32.mrb[0].mxu0
        %1937 = vdwg.mxu0
        %v1939 = vsel %vm1456, %v1885, 0
        %v1942 = vsel %vm1702, %v1889, 0
        %1944 = vmatprep.subr.bf16.mxu0 0
        %1945 = vmatpush1.bf16.msra.mxu0 %v1942
        %1946 = vmatprep.subr.bf16.mxu0 0
        %1947 = vmatpush1.bf16.msra.mxu0 0
        %1948 = vmatprep.subr.bf16.mxu0 0
        %1949 = vmatpush1.bf16.msra.mxu0 0
        %1950 = vmatprep.subr.bf16.mxu0 0
        %1951 = vmatpush1.bf16.msra.mxu0 0
        %1952 = vmatprep.subr.bf16.mxu0 0
        %1953 = vmatpush1.bf16.msra.mxu0 0
        %1954 = vmatprep.subr.bf16.mxu0 0
        %1955 = vmatpush1.bf16.msra.mxu0 0
        %1956 = vmatprep.subr.bf16.mxu0 0
        %1957 = vmatpush1.bf16.msra.mxu0 0
        %1958 = vmatprep.subr.bf16.mxu0 0
        %1959 = vmatpush1.bf16.msra.mxu0 0
        %1960 = vmatprep.subr.bf16.mxu0 0
        %1961 = vmatpush1.bf16.msra.mxu0 0
        %1962 = vmatprep.subr.bf16.mxu0 0
        %1963 = vmatpush1.bf16.msra.mxu0 0
        %1964 = vmatprep.subr.bf16.mxu0 0
        %1965 = vmatpush1.bf16.msra.mxu0 0
        %1966 = vmatprep.subr.bf16.mxu0 0
        %1967 = vmatpush1.bf16.msra.mxu0 0
        %1968 = vmatprep.subr.bf16.mxu0 0
        %1969 = vmatpush1.bf16.msra.mxu0 0
        %1970 = vmatprep.subr.bf16.mxu0 0
        %1971 = vmatpush1.bf16.msra.mxu0 0
        %1972 = vmatprep.subr.bf16.mxu0 0
        %1973 = vmatpush1.bf16.msra.mxu0 0
        %1974 = vmatprep.subr.bf16.mxu0 0
        %1975 = vmatpush1.bf16.msra.mxu0 0
        %1976 = vmatprep.mubr.bf16.mxu0 0
        %1977 = vmatmul.mubr.bf16.gmra.mrb[0].mxu0 %v1939
        %v1978 = vpop.f32.mrb[0].mxu0
        %v1979 = vadd.f32 0.0, %v1978
        %v1980 = vpop.f32.mrb[0].mxu0
        %v1981 = vpop.f32.mrb[0].mxu0
        %v1982 = vpop.f32.mrb[0].mxu0
        %1983 = vdwg.mxu0
        %v1985 = vsel %vm1456, %v1886, 0
        %v1988 = vsel %vm1702, %v1890, 0
        %1990 = vmatprep.subr.bf16.mxu0 0
        %1991 = vmatpush1.bf16.msra.mxu0 %v1988
        %1992 = vmatprep.subr.bf16.mxu0 0
        %1993 = vmatpush1.bf16.msra.mxu0 0
        %1994 = vmatprep.subr.bf16.mxu0 0
        %1995 = vmatpush1.bf16.msra.mxu0 0
        %1996 = vmatprep.subr.bf16.mxu0 0
        %1997 = vmatpush1.bf16.msra.mxu0 0
        %1998 = vmatprep.subr.bf16.mxu0 0
        %1999 = vmatpush1.bf16.msra.mxu0 0
        %2000 = vmatprep.subr.bf16.mxu0 0
        %2001 = vmatpush1.bf16.msra.mxu0 0
        %2002 = vmatprep.subr.bf16.mxu0 0
        %2003 = vmatpush1.bf16.msra.mxu0 0
        %2004 = vmatprep.subr.bf16.mxu0 0
        %2005 = vmatpush1.bf16.msra.mxu0 0
        %2006 = vmatprep.subr.bf16.mxu0 0
        %2007 = vmatpush1.bf16.msra.mxu0 0
        %2008 = vmatprep.subr.bf16.mxu0 0
        %2009 = vmatpush1.bf16.msra.mxu0 0
        %2010 = vmatprep.subr.bf16.mxu0 0
        %2011 = vmatpush1.bf16.msra.mxu0 0
        %2012 = vmatprep.subr.bf16.mxu0 0
        %2013 = vmatpush1.bf16.msra.mxu0 0
        %2014 = vmatprep.subr.bf16.mxu0 0
        %2015 = vmatpush1.bf16.msra.mxu0 0
        %2016 = vmatprep.subr.bf16.mxu0 0
        %2017 = vmatpush1.bf16.msra.mxu0 0
        %2018 = vmatprep.subr.bf16.mxu0 0
        %2019 = vmatpush1.bf16.msra.mxu0 0
        %2020 = vmatprep.subr.bf16.mxu0 0
        %2021 = vmatpush1.bf16.msra.mxu0 0
        %2022 = vmatprep.mubr.bf16.mxu0 0
        %2023 = vmatmul.mubr.bf16.gmra.mrb[0].mxu0 %v1985
        %v2024 = vpop.f32.mrb[0].mxu0
        %v2025 = vadd.f32 0.0, %v2024
        %v2026 = vpop.f32.mrb[0].mxu0
        %v2027 = vpop.f32.mrb[0].mxu0
        %v2028 = vpop.f32.mrb[0].mxu0
        %2029 = vdwg.mxu0
        %v2031 = vsel %vm1456, %v1887, 0
        %v2034 = vsel %vm1702, %v1891, 0
        %2036 = vmatprep.subr.bf16.mxu0 0
        %2037 = vmatpush1.bf16.msra.mxu0 %v2034
        %2038 = vmatprep.subr.bf16.mxu0 0
        %2039 = vmatpush1.bf16.msra.mxu0 0
        %2040 = vmatprep.subr.bf16.mxu0 0
        %2041 = vmatpush1.bf16.msra.mxu0 0
        %2042 = vmatprep.subr.bf16.mxu0 0
        %2043 = vmatpush1.bf16.msra.mxu0 0
        %2044 = vmatprep.subr.bf16.mxu0 0
        %2045 = vmatpush1.bf16.msra.mxu0 0
        %2046 = vmatprep.subr.bf16.mxu0 0
        %2047 = vmatpush1.bf16.msra.mxu0 0
        %2048 = vmatprep.subr.bf16.mxu0 0
        %2049 = vmatpush1.bf16.msra.mxu0 0
        %2050 = vmatprep.subr.bf16.mxu0 0
        %2051 = vmatpush1.bf16.msra.mxu0 0
        %2052 = vmatprep.subr.bf16.mxu0 0
        %2053 = vmatpush1.bf16.msra.mxu0 0
        %2054 = vmatprep.subr.bf16.mxu0 0
        %2055 = vmatpush1.bf16.msra.mxu0 0
        %2056 = vmatprep.subr.bf16.mxu0 0
        %2057 = vmatpush1.bf16.msra.mxu0 0
        %2058 = vmatprep.subr.bf16.mxu0 0
        %2059 = vmatpush1.bf16.msra.mxu0 0
        %2060 = vmatprep.subr.bf16.mxu0 0
        %2061 = vmatpush1.bf16.msra.mxu0 0
        %2062 = vmatprep.subr.bf16.mxu0 0
        %2063 = vmatpush1.bf16.msra.mxu0 0
        %2064 = vmatprep.subr.bf16.mxu0 0
        %2065 = vmatpush1.bf16.msra.mxu0 0
        %2066 = vmatprep.subr.bf16.mxu0 0
        %2067 = vmatpush1.bf16.msra.mxu0 0
        %2068 = vmatprep.mubr.bf16.mxu0 0
        %2069 = vmatmul.mubr.bf16.gmra.mrb[0].mxu0 %v2031
        %v2070 = vpop.f32.mrb[0].mxu0
        %v2071 = vadd.f32 0.0, %v2070
        %v2072 = vpop.f32.mrb[0].mxu0
        %v2073 = vpop.f32.mrb[0].mxu0
        %v2074 = vpop.f32.mrb[0].mxu0
        %2075 = vdwg.mxu0
        %v2076 = vsel %vm654, %v1933, 0.0
        %v2077 = vsel %vm654, %v1979, 0.0
        %v2078 = vadd.f32 %v2076, %v2077
        %v2079 = vsel %vm654, %v2025, 0.0
        %v2080 = vadd.f32 %v2078, %v2079
        %v2081 = vsel %vm654, %v2071, 0.0
        %v2082 = vadd.f32 %v2080, %v2081
        %v2083 = vld [vmem:[%s620] sm:$0x1]
        %v2085 = vlaneseq
        %v2086 = vshrl.u32 %v2085, 7
        %v2087 = vsub.s32 0, %v2086
        %v2088 = vrot.slane %v2083, %v2087
        %v2090 = vadd.f32 %v2082, %v2088
        %v2091 = vadd.f32 %v651, %v2090
        %v2092 = vld [vmem:[%s623] sm:$0x1]
        %v2093 = vld [vmem:[%s626] sm:$0x1]
        %v2094 = vsel %vm654, %v2091, 0.0
        %2095 = vadd.xlane.f32.xlu0 %v2094
        %v2096 = vpop.xlane.xlu0 %2095
        %v2097 = vmul.f32 %v2096, %v658
        %v2098 = vsub.f32 %v2091, %v2097
        %v2099 = vmul.f32 %v2098, %v2098
        %v2100 = vsel %vm654, %v2099, 0.0
        %2101 = vadd.xlane.f32.xlu0 %v2100
        %v2102 = vpop.xlane.xlu0 %2101
        %v2103 = vmul.f32 %v2102, %v658
        %v2104 = vadd.f32 %v2103, 1e-05
        %v2105 = vrsqrt.pop %v2104
        %v2106 = vmul.f32 %v2098, %v2105
        %v2108 = vlaneseq
        %v2109 = vshrl.u32 %v2108, 7
        %v2110 = vsub.s32 0, %v2109
        %v2111 = vrot.slane %v2092, %v2110
        %v2113 = vmul.f32 %v2106, %v2111
        %v2115 = vlaneseq
        %v2116 = vshrl.u32 %v2115, 7
        %v2117 = vsub.s32 0, %v2116
        %v2118 = vrot.slane %v2093, %v2117
        %v2120 = vadd.f32 %v2113, %v2118
        %v2121 = vpack.c.bf16 %v2120, %v2120
        %v2122 = vld [vmem:[%s631] sm:$0xf]
        %v2123 = vld [vmem:[%s631 + $0x4] sm:$0xf]
        %v2124 = vld [vmem:[%s631 + $0x8] sm:$0xf]
        %v2125 = vld [vmem:[%s631 + $0xc] sm:$0xf]
        %v2126 = vld [vmem:[%s634] sm:$0x1]
        %v2128 = vlaneseq
        %v2129 = vshrl.u32 %v2128, 7
        %v2130 = vsub.s32 0, %v2129
        %v2131 = vrot.slane %v2126, %v2130
        %v2137 = vunpack.c.l.b16 %v2122
        %v2138 = vunpack.c.l.b16 %v2123
        %v2139 = vunpack.c.l.b16 %v2124
        %v2140 = vunpack.c.l.b16 %v2125
        %v2141 = vpack.c.b16 %v2138, %v2137
        %v2142 = vpack.c.b16 %v2140, %v2139
        %v2146 = vsel %vm654, %v2121, 0
        %2148 = vmatprep.subr.bf16.mxu0 0
        %2149 = vmatpush1.bf16.msra.mxu0 %v2141
        %2150 = vmatprep.subr.bf16.mxu0 0
        %2151 = vmatpush1.bf16.msra.mxu0 %v2142
        %2152 = vmatprep.subr.bf16.mxu0 0
        %2153 = vmatpush1.bf16.msra.mxu0 0
        %2154 = vmatprep.subr.bf16.mxu0 0
        %2155 = vmatpush1.bf16.msra.mxu0 0
        %2156 = vmatprep.subr.bf16.mxu0 0
        %2157 = vmatpush1.bf16.msra.mxu0 0
        %2158 = vmatprep.subr.bf16.mxu0 0
        %2159 = vmatpush1.bf16.msra.mxu0 0
        %2160 = vmatprep.subr.bf16.mxu0 0
        %2161 = vmatpush1.bf16.msra.mxu0 0
        %2162 = vmatprep.subr.bf16.mxu0 0
        %2163 = vmatpush1.bf16.msra.mxu0 0
        %2164 = vmatprep.subr.bf16.mxu0 0
        %2165 = vmatpush1.bf16.msra.mxu0 0
        %2166 = vmatprep.subr.bf16.mxu0 0
        %2167 = vmatpush1.bf16.msra.mxu0 0
        %2168 = vmatprep.subr.bf16.mxu0 0
        %2169 = vmatpush1.bf16.msra.mxu0 0
        %2170 = vmatprep.subr.bf16.mxu0 0
        %2171 = vmatpush1.bf16.msra.mxu0 0
        %2172 = vmatprep.subr.bf16.mxu0 0
        %2173 = vmatpush1.bf16.msra.mxu0 0
        %2174 = vmatprep.subr.bf16.mxu0 0
        %2175 = vmatpush1.bf16.msra.mxu0 0
        %2176 = vmatprep.subr.bf16.mxu0 0
        %2177 = vmatpush1.bf16.msra.mxu0 0
        %2178 = vmatprep.subr.bf16.mxu0 0
        %2179 = vmatpush1.bf16.msra.mxu0 0
        %2180 = vmatprep.mubr.bf16.mxu0 0
        %2181 = vmatmul.mubr.bf16.gmra.mrb[0].mxu0 %v2146
        %v2182 = vpop.f32.mrb[0].mxu0
        %v2183 = vadd.f32 %v2131, %v2182
        %v2184 = vpop.f32.mrb[0].mxu0
        %v2185 = vpop.f32.mrb[0].mxu0
        %v2186 = vpop.f32.mrb[0].mxu0
        %2187 = vdwg.mxu0
        %v2188 = vmul.f32 %v2183, 0.5
        %v2189 = vmul.f32 %v2183, 0.70710677
        %v2190 = verf.f32.pop %v2189
        %v2191 = vadd.f32 %v2190, 1.0
        %v2192 = vmul.f32 %v2188, %v2191
        %v2193 = vpack.c.bf16 %v2192, %v2192
        %v2194 = vld [vmem:[%s639] sm:$0xf]
        %v2195 = vld [vmem:[%s639 + $0x4] sm:$0xf]
        %v2196 = vld [vmem:[%s639 + $0x8] sm:$0xf]
        %v2197 = vld [vmem:[%s639 + $0xc] sm:$0xf]
        %v2198 = vld [vmem:[%s639 + $0x10] sm:$0xf]
        %v2199 = vld [vmem:[%s639 + $0x14] sm:$0xf]
        %v2200 = vld [vmem:[%s639 + $0x18] sm:$0xf]
        %v2201 = vld [vmem:[%s639 + $0x1c] sm:$0xf]
        %v2202 = vld [vmem:[%s639 + $0x20] sm:$0xf]
        %v2203 = vld [vmem:[%s639 + $0x24] sm:$0xf]
        %v2204 = vld [vmem:[%s639 + $0x28] sm:$0xf]
        %v2205 = vld [vmem:[%s639 + $0x2c] sm:$0xf]
        %v2206 = vld [vmem:[%s639 + $0x30] sm:$0xf]
        %v2207 = vld [vmem:[%s639 + $0x34] sm:$0xf]
        %v2208 = vld [vmem:[%s639 + $0x38] sm:$0xf]
        %v2209 = vld [vmem:[%s639 + $0x3c] sm:$0xf]
        %v2210 = vld [vmem:[%s642] sm:$0x1]
        %v2212 = vlaneseq
        %v2213 = vshrl.u32 %v2212, 7
        %v2214 = vsub.s32 0, %v2213
        %v2215 = vrot.slane %v2210, %v2214
        %v2233 = vunpack.c.l.b16 %v2194
        %v2234 = vunpack.c.l.b16 %v2195
        %v2235 = vunpack.c.l.b16 %v2196
        %v2236 = vunpack.c.l.b16 %v2197
        %v2237 = vunpack.c.l.b16 %v2198
        %v2238 = vunpack.c.l.b16 %v2199
        %v2239 = vunpack.c.l.b16 %v2200
        %v2240 = vunpack.c.l.b16 %v2201
        %v2241 = vunpack.c.l.b16 %v2202
        %v2242 = vunpack.c.l.b16 %v2203
        %v2243 = vunpack.c.l.b16 %v2204
        %v2244 = vunpack.c.l.b16 %v2205
        %v2245 = vunpack.c.l.b16 %v2206
        %v2246 = vunpack.c.l.b16 %v2207
        %v2247 = vunpack.c.l.b16 %v2208
        %v2248 = vunpack.c.l.b16 %v2209
        %v2249 = vpack.c.b16 %v2234, %v2233
        %v2250 = vpack.c.b16 %v2236, %v2235
        %v2251 = vpack.c.b16 %v2238, %v2237
        %v2252 = vpack.c.b16 %v2240, %v2239
        %v2253 = vpack.c.b16 %v2242, %v2241
        %v2254 = vpack.c.b16 %v2244, %v2243
        %v2255 = vpack.c.b16 %v2246, %v2245
        %v2256 = vpack.c.b16 %v2248, %v2247
        %2265 = vmatprep.subr.bf16.mxu0 0
        %2266 = vmatpush1.bf16.msra.mxu0 %v2249
        %2267 = vmatprep.subr.bf16.mxu0 0
        %2268 = vmatpush1.bf16.msra.mxu0 %v2250
        %2269 = vmatprep.subr.bf16.mxu0 0
        %2270 = vmatpush1.bf16.msra.mxu0 %v2251
        %2271 = vmatprep.subr.bf16.mxu0 0
        %2272 = vmatpush1.bf16.msra.mxu0 %v2252
        %2273 = vmatprep.subr.bf16.mxu0 0
        %2274 = vmatpush1.bf16.msra.mxu0 %v2253
        %2275 = vmatprep.subr.bf16.mxu0 0
        %2276 = vmatpush1.bf16.msra.mxu0 %v2254
        %2277 = vmatprep.subr.bf16.mxu0 0
        %2278 = vmatpush1.bf16.msra.mxu0 %v2255
        %2279 = vmatprep.subr.bf16.mxu0 0
        %2280 = vmatpush1.bf16.msra.mxu0 %v2256
        %2281 = vmatprep.subr.bf16.mxu0 0
        %2282 = vmatpush1.bf16.msra.mxu0 0
        %2283 = vmatprep.subr.bf16.mxu0 0
        %2284 = vmatpush1.bf16.msra.mxu0 0
        %2285 = vmatprep.subr.bf16.mxu0 0
        %2286 = vmatpush1.bf16.msra.mxu0 0
        %2287 = vmatprep.subr.bf16.mxu0 0
        %2288 = vmatpush1.bf16.msra.mxu0 0
        %2289 = vmatprep.subr.bf16.mxu0 0
        %2290 = vmatpush1.bf16.msra.mxu0 0
        %2291 = vmatprep.subr.bf16.mxu0 0
        %2292 = vmatpush1.bf16.msra.mxu0 0
        %2293 = vmatprep.subr.bf16.mxu0 0
        %2294 = vmatpush1.bf16.msra.mxu0 0
        %2295 = vmatprep.subr.bf16.mxu0 0
        %2296 = vmatpush1.bf16.msra.mxu0 0
        %2297 = vmatprep.mubr.bf16.mxu0 0
        %2298 = vmatmul.mubr.bf16.gmra.mrb[0].mxu0 %v2193
        %v2299 = vpop.f32.mrb[0].mxu0
        %v2300 = vadd.f32 %v2215, %v2299
        %v2301 = vpop.f32.mrb[0].mxu0
        %v2302 = vpop.f32.mrb[0].mxu0
        %v2303 = vpop.f32.mrb[0].mxu0
        %2304 = vdwg.mxu0
        %v2305 = vadd.f32 %v2091, %v2300
        %2306 = vst.msk [vmem:[%s593] sm:$0xff] %vm654, %v2305
        %s2307 = sand.u32 %s385, 1
        %s2308 = scalar_lea.sflag [#allocation3], %s2307
        %s2309 = sand.u32 %s385, 1
        %s2310 = smul.addr %s2309, 8
        %s2311 = scalar_lea.vmem [#allocation2], %s2310
        // Predicated region
        $region77: #{tpu_custom_call.1} parent=71 // pred_check
          %p2312 = pneg %p395
        $region78: #{tpu_custom_call.1} parent=71 // pred_check_branch
          %2314 = sbr.rel (%p2312) target = $region80
        $region79: #{tpu_custom_call.1} parent=71 // pred_region
          %s2316 = ssub.s32 128, 128
          %2317 = vsyncadd %s2308, %s2316
          %s2318 = smul.addr %s31, 128
          %s2319 = scalar_lea.hbm %s13, %s2318
          %s2321 = sshll.u32 %s2311, 4
          %s2322 = int_to_ptr.vmem [resolvable:$true] %s2321
          %2324 = dma.vmem_to_hbm [thread:$0]  %s2322, 128, %s2319, %s2308
        $region80: #{tpu_custom_call.1} parent=71 // pred_fallthru
          _
      $region72: #{tpu_custom_call.1} parent=5 // pred_fallthru
        _
      %p2325 = scmp.le.s32.totalorder 2, %s22
      // Predicated region
      $region81: #{tpu_custom_call.1} parent=5 // pred_check
        %p2326 = pneg %p2325
      $region82: #{tpu_custom_call.1} parent=5 // pred_check_branch
        %2328 = sbr.rel (%p2326) target = $region84
      $region83: #{tpu_custom_call.1} parent=5 // pred_region
        %s2329 = ssub.s32 %s22, 2
        // Predicated region
        $region85: #{tpu_custom_call.1} parent=83 // pred_check
          %p2330 = pneg %p401
        $region86: #{tpu_custom_call.1} parent=83 // pred_check_branch
          %2332 = sbr.rel (%p2330) target = $region88
        $region87: #{tpu_custom_call.1} parent=83 // pred_region
          %s2333 = sand.u32 %s386, 1
          %s2334 = scalar_lea.sflag [#allocation3], %s2333
          %s2335 = sand.u32 %s386, 1
          %s2336 = smul.addr %s2335, 8
          %s2337 = scalar_lea.vmem [#allocation2], %s2336
          %2338 = dma.done %s2334, 128
        $region88: #{tpu_custom_call.1} parent=83 // pred_fallthru
          _
      $region84: #{tpu_custom_call.1} parent=5 // pred_fallthru
        _
    $region6: #{tpu_custom_call.1} parent=1 // loop_footer
      %s26 = sadd.s32 1, %s22
    $region7: #{tpu_custom_call.1} parent=1 // loop_footer_branch
      %21 = sbr.rel target = $region3
    $region8: #{tpu_custom_call.1} parent=1 // loop_exit
      _
    %2339 = vsyncpa [#allocation3], 1
    %s2340 = scalar_lea.sflag [#allocation3], 1
    %2341 = vsyncpa %s2340, 1

</llo_original>
